<compile_context>
chip_gen: v5e
topology: v5e:2x2
jax: 0.10.0
libtpu: 0.0.40
codegen_flags: <defaults>
</compile_context>

<pallas_src>
import math
from functools import partial

import jax
import jax.numpy as jnp
from jax import lax
from jax.experimental import pallas as pl
from jax.experimental.pallas import tpu as pltpu  # noqa: F401  (TPU backend)


# ----------------------------- config ---------------------------------------
class Args:
    hid_sz = 32
    inner_hid_sz = 64
    nheads = 2
    head_dim = 16
    attn_lim = 8          # L  (regular attention span / cache size)
    mem_sz = 8            # M  (current block length)
    compress_rate = 2     # c
    compress_size = 8     # -> C = compress_size // compress_rate = 4
    dropout = 0.0         # deterministic (eval mode)
    pre_norm = True
    nlayers = 2


# --------------------------- fused layer kernel ------------------------------
def _layer_kernel(x_ref, wqkv_ref, wo_ref, pe_ref, w1_ref, b1_ref, w2_ref,
                  b2_ref, ln1g_ref, ln1b_ref, ln2g_ref, ln2b_ref, o_ref,
                  *, B, M, Mk, Lc, K, D, L, C, c, pre_norm):
    """Entire TransformerSeqLayer forward in one invocation (all data in VMEM)."""
    KD = K * D
    BM, BMk, BLc = B * M, B * Mk, B * Lc
    Wk = Lc + Mk                    # concatenated key axis: [compressed | regular]
    scale = 1.0 / math.sqrt(D)
    neg = jnp.float32(-1e30)

    def layer_norm(x, g, b):
        mu = jnp.mean(x, axis=-1, keepdims=True)
        xc = x - mu
        var = jnp.mean(xc * xc, axis=-1, keepdims=True)
        return xc * lax.rsqrt(var + 1e-5) * g + b

    x_all = x_ref[...]                              # (BM+BMk+BLc, H) raw rows
    ln1_g, ln1_b = ln1g_ref[...], ln1b_ref[...]
    ln2_g, ln2_b = ln2g_ref[...], ln2b_ref[...]

    # pre-norm: normalize query/memory rows before projecting (shared norm1)
    proj_src = layer_norm(x_all, ln1_g, ln1_b) if pre_norm else x_all

    # One fused QKV projection for all rows: (N, H) x (H, 3*KD) on the MXU.
    proj = lax.dot_general(proj_src, wqkv_ref[...], (((1,), (1,)), ((), ())),
                           preferred_element_type=jnp.float32)       # (N, 3KD)

    q_all = proj[0:BM, 0:KD]                            # query rows  w/ wq
    k_all = proj[BM:BM + BMk, KD:2 * KD]                # memory rows w/ wk
    v_all = proj[BM:BM + BMk, 2 * KD:3 * KD]            # memory rows w/ wv
    ck_all = proj[BM + BMk:BM + BMk + BLc, KD:2 * KD]   # compressed  w/ wk
    cv_all = proj[BM + BMk:BM + BMk + BLc, 2 * KD:3 * KD]

    key_pe = pe_ref[...]                                # (D, C+1+L)

    # Band masks in absolute memory coordinates (replaces skew/unskew glue).
    row = lax.broadcasted_iota(jnp.int32, (M, Wk), 0)   # query position i
    col = lax.broadcasted_iota(jnp.int32, (M, Wk), 1)   # key position (concat)
    is_comp = col < Lc
    kr = col - Lc                                       # regular-memory column
    # compressed band: i//c <= k <= i//c + C  (integer-division free)
    mask_comp = is_comp & (row < (col + 1) * c) & (row >= (col - C) * c)
    # regular band:    i <= k < i + L
    mask_reg = jnp.logical_not(is_comp) & (kr >= row) & (kr < row + L)
    mask = mask_comp | mask_reg
    # One-hot selectors mapping each key_pe column to its absolute diagonal.
    sels = []
    for j in range(C + 1):   # compressed relative offset j  -> key_pe col j
        sels.append(is_comp & (row >= (col - j) * c) & (row < (col - j + 1) * c))
    for r in range(L):       # regular relative offset r     -> key_pe col C+1+r
        sels.append(jnp.logical_not(is_comp) & (kr == row + r))

    attn_rows = []
    for b in range(B):                                  # static unrolled loops
        q_b = q_all[b * M:(b + 1) * M, :]
        k_b = k_all[b * Mk:(b + 1) * Mk, :]
        v_b = v_all[b * Mk:(b + 1) * Mk, :]
        ck_b = ck_all[b * Lc:(b + 1) * Lc, :]
        cv_b = cv_all[b * Lc:(b + 1) * Lc, :]
        head_outs = []
        for hh in range(K):
            sl = slice(hh * D, (hh + 1) * D)
            q_h = q_b[:, sl]                                        # (M, D)
            kcat = jnp.concatenate([ck_b[:, sl], k_b[:, sl]], 0)    # (Wk, D)
            vcat = jnp.concatenate([cv_b[:, sl], v_b[:, sl]], 0)    # (Wk, D)
            scores = lax.dot_general(q_h, kcat, (((1,), (1,)), ((), ())),
                                     preferred_element_type=jnp.float32)
            pes = lax.dot_general(q_h, key_pe, (((1,), (0,)), ((), ())),
                                  preferred_element_type=jnp.float32)
            # scatter relative positional logits onto the absolute band
            pe_abs = jnp.zeros((M, Wk), jnp.float32)
            for w, sel in enumerate(sels):
                pe_abs = pe_abs + jnp.where(sel, pes[:, w:w + 1], 0.0)
            logits = jnp.where(mask, (scores + pe_abs) * scale, neg)
            m = jnp.max(logits, axis=-1, keepdims=True)
            e = jnp.exp(logits - m)
            probs = e / jnp.sum(e, axis=-1, keepdims=True)
            # TODO(synk): attention-prob dropout skipped (args.dropout == 0, eval)
            head_outs.append(
                lax.dot_general(probs, vcat, (((1,), (0,)), ((), ())),
                                preferred_element_type=jnp.float32))  # (M, D)
        attn_rows.append(jnp.concatenate(head_outs, axis=1))          # (M, KD)
    attn_cat = jnp.concatenate(attn_rows, axis=0)                     # (BM, KD)

    attn_out = lax.dot_general(attn_cat, wo_ref[...], (((1,), (1,)), ((), ())),
                               preferred_element_type=jnp.float32)    # (BM, H)

    raw_h = x_all[0:BM, :]
    if pre_norm:
        h2 = raw_h + attn_out
        ff_in = layer_norm(h2, ln2_g, ln2_b)
    else:
        h2 = layer_norm(raw_h + attn_out, ln1_g, ln1_b)
        ff_in = h2

    hmid = lax.dot_general(ff_in, w1_ref[...], (((1,), (1,)), ((), ())),
                           preferred_element_type=jnp.float32) + b1_ref[...]
    hmid = jnp.maximum(hmid, 0.0)
    ff_out = lax.dot_general(hmid, w2_ref[...], (((1,), (1,)), ((), ())),
                             preferred_element_type=jnp.float32) + b2_ref[...]

    out = (h2 + ff_out) if pre_norm else layer_norm(h2 + ff_out, ln2_g, ln2_b)
    o_ref[...] = out.astype(o_ref.dtype)


# ------------------------------ module forward --------------------------------
def transformer_seq_layer(params, args, h, h_memory, c_memory):
    B, M, H = h.shape
    Mk = h_memory.shape[1]
    Lc = c_memory.shape[1]
    K, D = args.nheads, args.head_dim
    L = args.attn_lim
    c = args.compress_rate
    C = args.compress_size // c
    assert M % c == 0 and Mk == M + L and Lc == C + M // c

    # stack all activation rows (raw) and all projection weights once
    x_all = jnp.concatenate(
        [h.reshape(B * M, H), h_memory.reshape(B * Mk, H),
         c_memory.reshape(B * Lc, H)], axis=0)
    wqkv = jnp.concatenate([params['wq'], params['wk'], params['wv']], axis=0)

    kernel = partial(_layer_kernel, B=B, M=M, Mk=Mk, Lc=Lc, K=K, D=D, L=L,
                     C=C, c=c, pre_norm=args.pre_norm)
    out2d = pl.pallas_call(
        kernel,
        out_shape=jax.ShapeDtypeStruct((B * M, H), h.dtype),
    )(x_all, wqkv, params['wo'], params['key_pe'],
      params['w1'], params['b1'], params['w2'], params['b2'],
      params['ln1_g'], params['ln1_b'], params['ln2_g'], params['ln2_b'])
    return out2d.reshape(B, M, H), 0.0


# ------------------------------ params ----------------------------------------
def init_params(args, key):
    H = args.hid_sz
    KD = args.nheads * args.head_dim
    I = args.inner_hid_sz
    C = args.compress_size // args.compress_rate
    ks = jax.random.split(key, 7)

    def w(k, shape, scale=0.05):
        return jax.random.normal(k, shape, jnp.float32) * scale

    p = {
        'wq': w(ks[0], (KD, H)),
        'wk': w(ks[1], (KD, H)),
        'wv': w(ks[2], (KD, H)),
        'wo': w(ks[3], (H, KD)),
        'key_pe': w(ks[4], (args.head_dim, args.attn_lim + C + 1), 0.1),
        'w1': w(ks[5], (I, H)),
        'b1': jnp.zeros((1, I), jnp.float32),
        'w2': w(ks[6], (H, I)),
        'b2': jnp.zeros((1, H), jnp.float32),
        'ln1_g': jnp.ones((1, H), jnp.float32),
        'ln1_b': jnp.zeros((1, H), jnp.float32),
        'ln2_g': jnp.ones((1, H), jnp.float32),
        'ln2_b': jnp.zeros((1, H), jnp.float32),
    }
    if args.pre_norm:
        p['wo'] = p['wo'] / math.sqrt(args.nlayers * 2)
    return p


# ------------------------------ main -------------------------------------------
if __name__ == "__main__":
    args = Args()
    key = jax.random.PRNGKey(0)
    kp, kh, km, kc = jax.random.split(key, 4)
    params = init_params(args, kp)

    B = 2
    M = args.mem_sz
    L = args.attn_lim
    c = args.compress_rate
    C = args.compress_size // c

    h = jax.random.normal(kh, (B, M, args.hid_sz), jnp.float32)
    h_memory = jax.random.normal(km, (B, M + L, args.hid_sz), jnp.float32)
    c_memory = jax.random.normal(kc, (B, C + M // c, args.hid_sz), jnp.float32)

    out, aux_loss = transformer_seq_layer(params, args, h, h_memory, c_memory)
    out = jax.block_until_ready(out)

    assert out.shape == (B, M, args.hid_sz)
    assert bool(jnp.all(jnp.isfinite(out)))
    print("KERNEL_OK")
</pallas_src>

<mosaic_0001>
module attributes {stable_mosaic.version = 11 : i64} {
  func.func @_layer_kernel(%arg0: memref<64x32xf32, #tpu.memory_space<vmem>>, %arg1: memref<96x32xf32, #tpu.memory_space<vmem>>, %arg2: memref<32x32xf32, #tpu.memory_space<vmem>>, %arg3: memref<16x13xf32, #tpu.memory_space<vmem>>, %arg4: memref<64x32xf32, #tpu.memory_space<vmem>>, %arg5: memref<1x64xf32, #tpu.memory_space<vmem>>, %arg6: memref<32x64xf32, #tpu.memory_space<vmem>>, %arg7: memref<1x32xf32, #tpu.memory_space<vmem>>, %arg8: memref<1x32xf32, #tpu.memory_space<vmem>>, %arg9: memref<1x32xf32, #tpu.memory_space<vmem>>, %arg10: memref<1x32xf32, #tpu.memory_space<vmem>>, %arg11: memref<1x32xf32, #tpu.memory_space<vmem>>, %arg12: memref<16x32xf32, #tpu.memory_space<vmem>>) attributes {dimension_semantics = [], scalar_prefetch = 0 : i64, scratch_operands = 0 : i64, tpu.core_type = #tpu.core_type<tc>} {
    %c0 = arith.constant 0 : index
    %c0_0 = arith.constant 0 : index
    %0 = vector.load %arg0[%c0, %c0_0] : memref<64x32xf32, #tpu.memory_space<vmem>>, vector<64x32xf32>
    %c0_1 = arith.constant 0 : index
    %c0_2 = arith.constant 0 : index
    %1 = vector.load %arg8[%c0_1, %c0_2] : memref<1x32xf32, #tpu.memory_space<vmem>>, vector<1x32xf32>
    %c0_3 = arith.constant 0 : index
    %c0_4 = arith.constant 0 : index
    %2 = vector.load %arg9[%c0_3, %c0_4] : memref<1x32xf32, #tpu.memory_space<vmem>>, vector<1x32xf32>
    %c0_5 = arith.constant 0 : index
    %c0_6 = arith.constant 0 : index
    %3 = vector.load %arg10[%c0_5, %c0_6] : memref<1x32xf32, #tpu.memory_space<vmem>>, vector<1x32xf32>
    %c0_7 = arith.constant 0 : index
    %c0_8 = arith.constant 0 : index
    %4 = vector.load %arg11[%c0_7, %c0_8] : memref<1x32xf32, #tpu.memory_space<vmem>>, vector<1x32xf32>
    %cst = arith.constant dense<0.000000e+00> : vector<64xf32>
    %5 = vector.multi_reduction <add>, %0, %cst [1] : vector<64x32xf32> to vector<64xf32>
    %6 = vector.shape_cast %5 : vector<64xf32> to vector<64x1xf32>
    %cst_9 = arith.constant 3.200000e+01 : f32
    %7 = vector.broadcast %cst_9 : f32 to vector<64x1xf32>
    %8 = arith.divf %6, %7 : vector<64x1xf32>
    %9 = vector.broadcast %8 : vector<64x1xf32> to vector<64x32xf32>
    %10 = arith.subf %0, %9 : vector<64x32xf32>
    %11 = arith.mulf %10, %10 : vector<64x32xf32>
    %cst_10 = arith.constant dense<0.000000e+00> : vector<64xf32>
    %12 = vector.multi_reduction <add>, %11, %cst_10 [1] : vector<64x32xf32> to vector<64xf32>
    %13 = vector.shape_cast %12 : vector<64xf32> to vector<64x1xf32>
    %cst_11 = arith.constant 3.200000e+01 : f32
    %14 = vector.broadcast %cst_11 : f32 to vector<64x1xf32>
    %15 = arith.divf %13, %14 : vector<64x1xf32>
    %cst_12 = arith.constant 9.99999974E-6 : f32
    %16 = vector.broadcast %cst_12 : f32 to vector<64x1xf32>
    %17 = arith.addf %15, %16 : vector<64x1xf32>
    %18 = math.rsqrt %17 : vector<64x1xf32>
    %19 = vector.broadcast %18 : vector<64x1xf32> to vector<64x32xf32>
    %20 = arith.mulf %10, %19 : vector<64x32xf32>
    %21 = vector.broadcast %1 : vector<1x32xf32> to vector<64x32xf32>
    %22 = arith.mulf %20, %21 : vector<64x32xf32>
    %23 = vector.broadcast %2 : vector<1x32xf32> to vector<64x32xf32>
    %24 = arith.addf %22, %23 : vector<64x32xf32>
    %c0_13 = arith.constant 0 : index
    %c0_14 = arith.constant 0 : index
    %25 = vector.load %arg1[%c0_13, %c0_14] : memref<96x32xf32, #tpu.memory_space<vmem>>, vector<96x32xf32>
    %cst_15 = arith.constant dense<0.000000e+00> : vector<64x96xf32>
    %26 = tpu.matmul %24, %25, %cst_15 {dimension_numbers = #tpu.dot_dimension_numbers<[1], [1], [0], [0], [0, 0, 1, 0], [], []>} : vector<64x32xf32>, vector<96x32xf32>, vector<64x96xf32> -> vector<64x96xf32>
    %27 = vector.extract_strided_slice %26 {offsets = [0, 0], sizes = [16, 32], strides = [1, 1]} : vector<64x96xf32> to vector<16x32xf32>
    %28 = vector.extract_strided_slice %26 {offsets = [16, 32], sizes = [32, 32], strides = [1, 1]} : vector<64x96xf32> to vector<32x32xf32>
    %29 = vector.extract_strided_slice %26 {offsets = [16, 64], sizes = [32, 32], strides = [1, 1]} : vector<64x96xf32> to vector<32x32xf32>
    %30 = vector.extract_strided_slice %26 {offsets = [48, 32], sizes = [16, 32], strides = [1, 1]} : vector<64x96xf32> to vector<16x32xf32>
    %31 = vector.extract_strided_slice %26 {offsets = [48, 64], sizes = [16, 32], strides = [1, 1]} : vector<64x96xf32> to vector<16x32xf32>
    %c0_16 = arith.constant 0 : index
    %c0_17 = arith.constant 0 : index
    %32 = vector.load %arg3[%c0_16, %c0_17] : memref<16x13xf32, #tpu.memory_space<vmem>>, vector<16x13xf32>
    %33 = tpu.iota {dimensions = array<i32: 0>} : vector<8x24xi32>
    %34 = tpu.iota {dimensions = array<i32: 1>} : vector<8x24xi32>
    %c8_i32 = arith.constant 8 : i32
    %35 = vector.broadcast %c8_i32 : i32 to vector<8x24xi32>
    %36 = arith.cmpi slt, %34, %35 : vector<8x24xi32>
    %c8_i32_18 = arith.constant 8 : i32
    %37 = vector.broadcast %c8_i32_18 : i32 to vector<8x24xi32>
    %38 = arith.subi %34, %37 : vector<8x24xi32>
    %c1_i32 = arith.constant 1 : i32
    %39 = vector.broadcast %c1_i32 : i32 to vector<8x24xi32>
    %40 = arith.addi %34, %39 : vector<8x24xi32>
    %c2_i32 = arith.constant 2 : i32
    %41 = vector.broadcast %c2_i32 : i32 to vector<8x24xi32>
    %42 = arith.muli %40, %41 : vector<8x24xi32>
    %43 = arith.cmpi slt, %33, %42 : vector<8x24xi32>
    %44 = arith.andi %36, %43 : vector<8x24xi1>
    %c4_i32 = arith.constant 4 : i32
    %45 = vector.broadcast %c4_i32 : i32 to vector<8x24xi32>
    %46 = arith.subi %34, %45 : vector<8x24xi32>
    %c2_i32_19 = arith.constant 2 : i32
    %47 = vector.broadcast %c2_i32_19 : i32 to vector<8x24xi32>
    %48 = arith.muli %46, %47 : vector<8x24xi32>
    %49 = arith.cmpi sge, %33, %48 : vector<8x24xi32>
    %50 = arith.andi %44, %49 : vector<8x24xi1>
    %cst_20 = arith.constant dense<true> : vector<8x24xi1>
    %51 = arith.xori %36, %cst_20 : vector<8x24xi1>
    %52 = arith.cmpi sge, %38, %33 : vector<8x24xi32>
    %53 = arith.andi %51, %52 : vector<8x24xi1>
    %c8_i32_21 = arith.constant 8 : i32
    %54 = vector.broadcast %c8_i32_21 : i32 to vector<8x24xi32>
    %55 = arith.addi %33, %54 : vector<8x24xi32>
    %56 = arith.cmpi slt, %38, %55 : vector<8x24xi32>
    %57 = arith.andi %53, %56 : vector<8x24xi1>
    %58 = arith.ori %50, %57 : vector<8x24xi1>
    %c0_i32 = arith.constant 0 : i32
    %59 = vector.broadcast %c0_i32 : i32 to vector<8x24xi32>
    %60 = arith.subi %34, %59 : vector<8x24xi32>
    %c2_i32_22 = arith.constant 2 : i32
    %61 = vector.broadcast %c2_i32_22 : i32 to vector<8x24xi32>
    %62 = arith.muli %60, %61 : vector<8x24xi32>
    %63 = arith.cmpi sge, %33, %62 : vector<8x24xi32>
    %64 = arith.andi %36, %63 : vector<8x24xi1>
    %c0_i32_23 = arith.constant 0 : i32
    %65 = vector.broadcast %c0_i32_23 : i32 to vector<8x24xi32>
    %66 = arith.subi %34, %65 : vector<8x24xi32>
    %c1_i32_24 = arith.constant 1 : i32
    %67 = vector.broadcast %c1_i32_24 : i32 to vector<8x24xi32>
    %68 = arith.addi %66, %67 : vector<8x24xi32>
    %c2_i32_25 = arith.constant 2 : i32
    %69 = vector.broadcast %c2_i32_25 : i32 to vector<8x24xi32>
    %70 = arith.muli %68, %69 : vector<8x24xi32>
    %71 = arith.cmpi slt, %33, %70 : vector<8x24xi32>
    %72 = arith.andi %64, %71 : vector<8x24xi1>
    %c1_i32_26 = arith.constant 1 : i32
    %73 = vector.broadcast %c1_i32_26 : i32 to vector<8x24xi32>
    %74 = arith.subi %34, %73 : vector<8x24xi32>
    %c2_i32_27 = arith.constant 2 : i32
    %75 = vector.broadcast %c2_i32_27 : i32 to vector<8x24xi32>
    %76 = arith.muli %74, %75 : vector<8x24xi32>
    %77 = arith.cmpi sge, %33, %76 : vector<8x24xi32>
    %78 = arith.andi %36, %77 : vector<8x24xi1>
    %c1_i32_28 = arith.constant 1 : i32
    %79 = vector.broadcast %c1_i32_28 : i32 to vector<8x24xi32>
    %80 = arith.subi %34, %79 : vector<8x24xi32>
    %c1_i32_29 = arith.constant 1 : i32
    %81 = vector.broadcast %c1_i32_29 : i32 to vector<8x24xi32>
    %82 = arith.addi %80, %81 : vector<8x24xi32>
    %c2_i32_30 = arith.constant 2 : i32
    %83 = vector.broadcast %c2_i32_30 : i32 to vector<8x24xi32>
    %84 = arith.muli %82, %83 : vector<8x24xi32>
    %85 = arith.cmpi slt, %33, %84 : vector<8x24xi32>
    %86 = arith.andi %78, %85 : vector<8x24xi1>
    %c2_i32_31 = arith.constant 2 : i32
    %87 = vector.broadcast %c2_i32_31 : i32 to vector<8x24xi32>
    %88 = arith.subi %34, %87 : vector<8x24xi32>
    %c2_i32_32 = arith.constant 2 : i32
    %89 = vector.broadcast %c2_i32_32 : i32 to vector<8x24xi32>
    %90 = arith.muli %88, %89 : vector<8x24xi32>
    %91 = arith.cmpi sge, %33, %90 : vector<8x24xi32>
    %92 = arith.andi %36, %91 : vector<8x24xi1>
    %c2_i32_33 = arith.constant 2 : i32
    %93 = vector.broadcast %c2_i32_33 : i32 to vector<8x24xi32>
    %94 = arith.subi %34, %93 : vector<8x24xi32>
    %c1_i32_34 = arith.constant 1 : i32
    %95 = vector.broadcast %c1_i32_34 : i32 to vector<8x24xi32>
    %96 = arith.addi %94, %95 : vector<8x24xi32>
    %c2_i32_35 = arith.constant 2 : i32
    %97 = vector.broadcast %c2_i32_35 : i32 to vector<8x24xi32>
    %98 = arith.muli %96, %97 : vector<8x24xi32>
    %99 = arith.cmpi slt, %33, %98 : vector<8x24xi32>
    %100 = arith.andi %92, %99 : vector<8x24xi1>
    %c3_i32 = arith.constant 3 : i32
    %101 = vector.broadcast %c3_i32 : i32 to vector<8x24xi32>
    %102 = arith.subi %34, %101 : vector<8x24xi32>
    %c2_i32_36 = arith.constant 2 : i32
    %103 = vector.broadcast %c2_i32_36 : i32 to vector<8x24xi32>
    %104 = arith.muli %102, %103 : vector<8x24xi32>
    %105 = arith.cmpi sge, %33, %104 : vector<8x24xi32>
    %106 = arith.andi %36, %105 : vector<8x24xi1>
    %c3_i32_37 = arith.constant 3 : i32
    %107 = vector.broadcast %c3_i32_37 : i32 to vector<8x24xi32>
    %108 = arith.subi %34, %107 : vector<8x24xi32>
    %c1_i32_38 = arith.constant 1 : i32
    %109 = vector.broadcast %c1_i32_38 : i32 to vector<8x24xi32>
    %110 = arith.addi %108, %109 : vector<8x24xi32>
    %c2_i32_39 = arith.constant 2 : i32
    %111 = vector.broadcast %c2_i32_39 : i32 to vector<8x24xi32>
    %112 = arith.muli %110, %111 : vector<8x24xi32>
    %113 = arith.cmpi slt, %33, %112 : vector<8x24xi32>
    %114 = arith.andi %106, %113 : vector<8x24xi1>
    %c4_i32_40 = arith.constant 4 : i32
    %115 = vector.broadcast %c4_i32_40 : i32 to vector<8x24xi32>
    %116 = arith.subi %34, %115 : vector<8x24xi32>
    %c2_i32_41 = arith.constant 2 : i32
    %117 = vector.broadcast %c2_i32_41 : i32 to vector<8x24xi32>
    %118 = arith.muli %116, %117 : vector<8x24xi32>
    %119 = arith.cmpi sge, %33, %118 : vector<8x24xi32>
    %120 = arith.andi %36, %119 : vector<8x24xi1>
    %c4_i32_42 = arith.constant 4 : i32
    %121 = vector.broadcast %c4_i32_42 : i32 to vector<8x24xi32>
    %122 = arith.subi %34, %121 : vector<8x24xi32>
    %c1_i32_43 = arith.constant 1 : i32
    %123 = vector.broadcast %c1_i32_43 : i32 to vector<8x24xi32>
    %124 = arith.addi %122, %123 : vector<8x24xi32>
    %c2_i32_44 = arith.constant 2 : i32
    %125 = vector.broadcast %c2_i32_44 : i32 to vector<8x24xi32>
    %126 = arith.muli %124, %125 : vector<8x24xi32>
    %127 = arith.cmpi slt, %33, %126 : vector<8x24xi32>
    %128 = arith.andi %120, %127 : vector<8x24xi1>
    %cst_45 = arith.constant dense<true> : vector<8x24xi1>
    %129 = arith.xori %36, %cst_45 : vector<8x24xi1>
    %c0_i32_46 = arith.constant 0 : i32
    %130 = vector.broadcast %c0_i32_46 : i32 to vector<8x24xi32>
    %131 = arith.addi %33, %130 : vector<8x24xi32>
    %132 = arith.cmpi eq, %38, %131 : vector<8x24xi32>
    %133 = arith.andi %129, %132 : vector<8x24xi1>
    %cst_47 = arith.constant dense<true> : vector<8x24xi1>
    %134 = arith.xori %36, %cst_47 : vector<8x24xi1>
    %c1_i32_48 = arith.constant 1 : i32
    %135 = vector.broadcast %c1_i32_48 : i32 to vector<8x24xi32>
    %136 = arith.addi %33, %135 : vector<8x24xi32>
    %137 = arith.cmpi eq, %38, %136 : vector<8x24xi32>
    %138 = arith.andi %134, %137 : vector<8x24xi1>
    %cst_49 = arith.constant dense<true> : vector<8x24xi1>
    %139 = arith.xori %36, %cst_49 : vector<8x24xi1>
    %c2_i32_50 = arith.constant 2 : i32
    %140 = vector.broadcast %c2_i32_50 : i32 to vector<8x24xi32>
    %141 = arith.addi %33, %140 : vector<8x24xi32>
    %142 = arith.cmpi eq, %38, %141 : vector<8x24xi32>
    %143 = arith.andi %139, %142 : vector<8x24xi1>
    %cst_51 = arith.constant dense<true> : vector<8x24xi1>
    %144 = arith.xori %36, %cst_51 : vector<8x24xi1>
    %c3_i32_52 = arith.constant 3 : i32
    %145 = vector.broadcast %c3_i32_52 : i32 to vector<8x24xi32>
    %146 = arith.addi %33, %145 : vector<8x24xi32>
    %147 = arith.cmpi eq, %38, %146 : vector<8x24xi32>
    %148 = arith.andi %144, %147 : vector<8x24xi1>
    %cst_53 = arith.constant dense<true> : vector<8x24xi1>
    %149 = arith.xori %36, %cst_53 : vector<8x24xi1>
    %c4_i32_54 = arith.constant 4 : i32
    %150 = vector.broadcast %c4_i32_54 : i32 to vector<8x24xi32>
    %151 = arith.addi %33, %150 : vector<8x24xi32>
    %152 = arith.cmpi eq, %38, %151 : vector<8x24xi32>
    %153 = arith.andi %149, %152 : vector<8x24xi1>
    %cst_55 = arith.constant dense<true> : vector<8x24xi1>
    %154 = arith.xori %36, %cst_55 : vector<8x24xi1>
    %c5_i32 = arith.constant 5 : i32
    %155 = vector.broadcast %c5_i32 : i32 to vector<8x24xi32>
    %156 = arith.addi %33, %155 : vector<8x24xi32>
    %157 = arith.cmpi eq, %38, %156 : vector<8x24xi32>
    %158 = arith.andi %154, %157 : vector<8x24xi1>
    %cst_56 = arith.constant dense<true> : vector<8x24xi1>
    %159 = arith.xori %36, %cst_56 : vector<8x24xi1>
    %c6_i32 = arith.constant 6 : i32
    %160 = vector.broadcast %c6_i32 : i32 to vector<8x24xi32>
    %161 = arith.addi %33, %160 : vector<8x24xi32>
    %162 = arith.cmpi eq, %38, %161 : vector<8x24xi32>
    %163 = arith.andi %159, %162 : vector<8x24xi1>
    %cst_57 = arith.constant dense<true> : vector<8x24xi1>
    %164 = arith.xori %36, %cst_57 : vector<8x24xi1>
    %c7_i32 = arith.constant 7 : i32
    %165 = vector.broadcast %c7_i32 : i32 to vector<8x24xi32>
    %166 = arith.addi %33, %165 : vector<8x24xi32>
    %167 = arith.cmpi eq, %38, %166 : vector<8x24xi32>
    %168 = arith.andi %164, %167 : vector<8x24xi1>
    %169 = vector.extract_strided_slice %27 {offsets = [0, 0], sizes = [8, 32], strides = [1, 1]} : vector<16x32xf32> to vector<8x32xf32>
    %170 = vector.extract_strided_slice %28 {offsets = [0, 0], sizes = [16, 32], strides = [1, 1]} : vector<32x32xf32> to vector<16x32xf32>
    %171 = vector.extract_strided_slice %29 {offsets = [0, 0], sizes = [16, 32], strides = [1, 1]} : vector<32x32xf32> to vector<16x32xf32>
    %172 = vector.extract_strided_slice %30 {offsets = [0, 0], sizes = [8, 32], strides = [1, 1]} : vector<16x32xf32> to vector<8x32xf32>
    %173 = vector.extract_strided_slice %31 {offsets = [0, 0], sizes = [8, 32], strides = [1, 1]} : vector<16x32xf32> to vector<8x32xf32>
    %174 = vector.extract_strided_slice %169 {offsets = [0, 0], sizes = [8, 16], strides = [1, 1]} : vector<8x32xf32> to vector<8x16xf32>
    %175 = vector.extract_strided_slice %172 {offsets = [0, 0], sizes = [8, 16], strides = [1, 1]} : vector<8x32xf32> to vector<8x16xf32>
    %176 = vector.extract_strided_slice %170 {offsets = [0, 0], sizes = [16, 16], strides = [1, 1]} : vector<16x32xf32> to vector<16x16xf32>
    %177 = tpu.concatenate %175, %176 in 0 : vector<8x16xf32>, vector<16x16xf32> -> vector<24x16xf32>
    %178 = vector.extract_strided_slice %173 {offsets = [0, 0], sizes = [8, 16], strides = [1, 1]} : vector<8x32xf32> to vector<8x16xf32>
    %179 = vector.extract_strided_slice %171 {offsets = [0, 0], sizes = [16, 16], strides = [1, 1]} : vector<16x32xf32> to vector<16x16xf32>
    %180 = tpu.concatenate %178, %179 in 0 : vector<8x16xf32>, vector<16x16xf32> -> vector<24x16xf32>
    %cst_58 = arith.constant dense<0.000000e+00> : vector<8x24xf32>
    %181 = tpu.matmul %174, %177, %cst_58 {dimension_numbers = #tpu.dot_dimension_numbers<[1], [1], [0], [0], [0, 0, 1, 0], [], []>} : vector<8x16xf32>, vector<24x16xf32>, vector<8x24xf32> -> vector<8x24xf32>
    %cst_59 = arith.constant dense<0.000000e+00> : vector<8x13xf32>
    %182 = tpu.matmul %174, %32, %cst_59 {dimension_numbers = #tpu.dot_dimension_numbers<[1], [0], [0], [1], [0, 0, 1, 1], [], []>} : vector<8x16xf32>, vector<16x13xf32>, vector<8x13xf32> -> vector<8x13xf32>
    %cst_60 = arith.constant 0.000000e+00 : f32
    %183 = vector.broadcast %cst_60 : f32 to vector<8x24xf32>
    %184 = vector.extract_strided_slice %182 {offsets = [0, 0], sizes = [8, 1], strides = [1, 1]} : vector<8x13xf32> to vector<8x1xf32>
    %cst_61 = arith.constant 0.000000e+00 : f32
    %185 = vector.shape_cast %184 : vector<8x1xf32> to vector<8x1xf32>
    %186 = vector.broadcast %185 : vector<8x1xf32> to vector<8x24xf32>
    %187 = vector.broadcast %cst_61 : f32 to vector<8x24xf32>
    %188 = arith.select %72, %186, %187 : vector<8x24xi1>, vector<8x24xf32>
    %189 = arith.addf %183, %188 : vector<8x24xf32>
    %190 = vector.extract_strided_slice %182 {offsets = [0, 1], sizes = [8, 1], strides = [1, 1]} : vector<8x13xf32> to vector<8x1xf32>
    %cst_62 = arith.constant 0.000000e+00 : f32
    %191 = vector.shape_cast %190 : vector<8x1xf32> to vector<8x1xf32>
    %192 = vector.broadcast %191 : vector<8x1xf32> to vector<8x24xf32>
    %193 = vector.broadcast %cst_62 : f32 to vector<8x24xf32>
    %194 = arith.select %86, %192, %193 : vector<8x24xi1>, vector<8x24xf32>
    %195 = arith.addf %189, %194 : vector<8x24xf32>
    %196 = vector.extract_strided_slice %182 {offsets = [0, 2], sizes = [8, 1], strides = [1, 1]} : vector<8x13xf32> to vector<8x1xf32>
    %cst_63 = arith.constant 0.000000e+00 : f32
    %197 = vector.shape_cast %196 : vector<8x1xf32> to vector<8x1xf32>
    %198 = vector.broadcast %197 : vector<8x1xf32> to vector<8x24xf32>
    %199 = vector.broadcast %cst_63 : f32 to vector<8x24xf32>
    %200 = arith.select %100, %198, %199 : vector<8x24xi1>, vector<8x24xf32>
    %201 = arith.addf %195, %200 : vector<8x24xf32>
    %202 = vector.extract_strided_slice %182 {offsets = [0, 3], sizes = [8, 1], strides = [1, 1]} : vector<8x13xf32> to vector<8x1xf32>
    %cst_64 = arith.constant 0.000000e+00 : f32
    %203 = vector.shape_cast %202 : vector<8x1xf32> to vector<8x1xf32>
    %204 = vector.broadcast %203 : vector<8x1xf32> to vector<8x24xf32>
    %205 = vector.broadcast %cst_64 : f32 to vector<8x24xf32>
    %206 = arith.select %114, %204, %205 : vector<8x24xi1>, vector<8x24xf32>
    %207 = arith.addf %201, %206 : vector<8x24xf32>
    %208 = vector.extract_strided_slice %182 {offsets = [0, 4], sizes = [8, 1], strides = [1, 1]} : vector<8x13xf32> to vector<8x1xf32>
    %cst_65 = arith.constant 0.000000e+00 : f32
    %209 = vector.shape_cast %208 : vector<8x1xf32> to vector<8x1xf32>
    %210 = vector.broadcast %209 : vector<8x1xf32> to vector<8x24xf32>
    %211 = vector.broadcast %cst_65 : f32 to vector<8x24xf32>
    %212 = arith.select %128, %210, %211 : vector<8x24xi1>, vector<8x24xf32>
    %213 = arith.addf %207, %212 : vector<8x24xf32>
    %214 = vector.extract_strided_slice %182 {offsets = [0, 5], sizes = [8, 1], strides = [1, 1]} : vector<8x13xf32> to vector<8x1xf32>
    %cst_66 = arith.constant 0.000000e+00 : f32
    %215 = vector.shape_cast %214 : vector<8x1xf32> to vector<8x1xf32>
    %216 = vector.broadcast %215 : vector<8x1xf32> to vector<8x24xf32>
    %217 = vector.broadcast %cst_66 : f32 to vector<8x24xf32>
    %218 = arith.select %133, %216, %217 : vector<8x24xi1>, vector<8x24xf32>
    %219 = arith.addf %213, %218 : vector<8x24xf32>
    %220 = vector.extract_strided_slice %182 {offsets = [0, 6], sizes = [8, 1], strides = [1, 1]} : vector<8x13xf32> to vector<8x1xf32>
    %cst_67 = arith.constant 0.000000e+00 : f32
    %221 = vector.shape_cast %220 : vector<8x1xf32> to vector<8x1xf32>
    %222 = vector.broadcast %221 : vector<8x1xf32> to vector<8x24xf32>
    %223 = vector.broadcast %cst_67 : f32 to vector<8x24xf32>
    %224 = arith.select %138, %222, %223 : vector<8x24xi1>, vector<8x24xf32>
    %225 = arith.addf %219, %224 : vector<8x24xf32>
    %226 = vector.extract_strided_slice %182 {offsets = [0, 7], sizes = [8, 1], strides = [1, 1]} : vector<8x13xf32> to vector<8x1xf32>
    %cst_68 = arith.constant 0.000000e+00 : f32
    %227 = vector.shape_cast %226 : vector<8x1xf32> to vector<8x1xf32>
    %228 = vector.broadcast %227 : vector<8x1xf32> to vector<8x24xf32>
    %229 = vector.broadcast %cst_68 : f32 to vector<8x24xf32>
    %230 = arith.select %143, %228, %229 : vector<8x24xi1>, vector<8x24xf32>
    %231 = arith.addf %225, %230 : vector<8x24xf32>
    %232 = vector.extract_strided_slice %182 {offsets = [0, 8], sizes = [8, 1], strides = [1, 1]} : vector<8x13xf32> to vector<8x1xf32>
    %cst_69 = arith.constant 0.000000e+00 : f32
    %233 = vector.shape_cast %232 : vector<8x1xf32> to vector<8x1xf32>
    %234 = vector.broadcast %233 : vector<8x1xf32> to vector<8x24xf32>
    %235 = vector.broadcast %cst_69 : f32 to vector<8x24xf32>
    %236 = arith.select %148, %234, %235 : vector<8x24xi1>, vector<8x24xf32>
    %237 = arith.addf %231, %236 : vector<8x24xf32>
    %238 = vector.extract_strided_slice %182 {offsets = [0, 9], sizes = [8, 1], strides = [1, 1]} : vector<8x13xf32> to vector<8x1xf32>
    %cst_70 = arith.constant 0.000000e+00 : f32
    %239 = vector.shape_cast %238 : vector<8x1xf32> to vector<8x1xf32>
    %240 = vector.broadcast %239 : vector<8x1xf32> to vector<8x24xf32>
    %241 = vector.broadcast %cst_70 : f32 to vector<8x24xf32>
    %242 = arith.select %153, %240, %241 : vector<8x24xi1>, vector<8x24xf32>
    %243 = arith.addf %237, %242 : vector<8x24xf32>
    %244 = vector.extract_strided_slice %182 {offsets = [0, 10], sizes = [8, 1], strides = [1, 1]} : vector<8x13xf32> to vector<8x1xf32>
    %cst_71 = arith.constant 0.000000e+00 : f32
    %245 = vector.shape_cast %244 : vector<8x1xf32> to vector<8x1xf32>
    %246 = vector.broadcast %245 : vector<8x1xf32> to vector<8x24xf32>
    %247 = vector.broadcast %cst_71 : f32 to vector<8x24xf32>
    %248 = arith.select %158, %246, %247 : vector<8x24xi1>, vector<8x24xf32>
    %249 = arith.addf %243, %248 : vector<8x24xf32>
    %250 = vector.extract_strided_slice %182 {offsets = [0, 11], sizes = [8, 1], strides = [1, 1]} : vector<8x13xf32> to vector<8x1xf32>
    %cst_72 = arith.constant 0.000000e+00 : f32
    %251 = vector.shape_cast %250 : vector<8x1xf32> to vector<8x1xf32>
    %252 = vector.broadcast %251 : vector<8x1xf32> to vector<8x24xf32>
    %253 = vector.broadcast %cst_72 : f32 to vector<8x24xf32>
    %254 = arith.select %163, %252, %253 : vector<8x24xi1>, vector<8x24xf32>
    %255 = arith.addf %249, %254 : vector<8x24xf32>
    %256 = vector.extract_strided_slice %182 {offsets = [0, 12], sizes = [8, 1], strides = [1, 1]} : vector<8x13xf32> to vector<8x1xf32>
    %cst_73 = arith.constant 0.000000e+00 : f32
    %257 = vector.shape_cast %256 : vector<8x1xf32> to vector<8x1xf32>
    %258 = vector.broadcast %257 : vector<8x1xf32> to vector<8x24xf32>
    %259 = vector.broadcast %cst_73 : f32 to vector<8x24xf32>
    %260 = arith.select %168, %258, %259 : vector<8x24xi1>, vector<8x24xf32>
    %261 = arith.addf %255, %260 : vector<8x24xf32>
    %262 = arith.addf %181, %261 : vector<8x24xf32>
    %cst_74 = arith.constant 2.500000e-01 : f32
    %263 = vector.broadcast %cst_74 : f32 to vector<8x24xf32>
    %264 = arith.mulf %262, %263 : vector<8x24xf32>
    %cst_75 = arith.constant -1.000000e+30 : f32
    %265 = vector.broadcast %cst_75 : f32 to vector<8x24xf32>
    %266 = arith.select %58, %264, %265 : vector<8x24xi1>, vector<8x24xf32>
    %cst_76 = arith.constant dense<0xFF800000> : vector<8xf32>
    %267 = vector.multi_reduction <maximumf>, %266, %cst_76 [1] : vector<8x24xf32> to vector<8xf32>
    %268 = vector.shape_cast %267 : vector<8xf32> to vector<8x1xf32>
    %269 = vector.broadcast %268 : vector<8x1xf32> to vector<8x24xf32>
    %270 = arith.subf %266, %269 : vector<8x24xf32>
    %271 = math.exp %270 : vector<8x24xf32>
    %cst_77 = arith.constant dense<0.000000e+00> : vector<8xf32>
    %272 = vector.multi_reduction <add>, %271, %cst_77 [1] : vector<8x24xf32> to vector<8xf32>
    %273 = vector.shape_cast %272 : vector<8xf32> to vector<8x1xf32>
    %274 = vector.broadcast %273 : vector<8x1xf32> to vector<8x24xf32>
    %275 = arith.divf %271, %274 : vector<8x24xf32>
    %cst_78 = arith.constant dense<0.000000e+00> : vector<8x16xf32>
    %276 = tpu.matmul %275, %180, %cst_78 {dimension_numbers = #tpu.dot_dimension_numbers<[1], [0], [0], [1], [0, 0, 1, 1], [], []>} : vector<8x24xf32>, vector<24x16xf32>, vector<8x16xf32> -> vector<8x16xf32>
    %277 = vector.extract_strided_slice %169 {offsets = [0, 16], sizes = [8, 16], strides = [1, 1]} : vector<8x32xf32> to vector<8x16xf32>
    %278 = vector.extract_strided_slice %172 {offsets = [0, 16], sizes = [8, 16], strides = [1, 1]} : vector<8x32xf32> to vector<8x16xf32>
    %279 = vector.extract_strided_slice %170 {offsets = [0, 16], sizes = [16, 16], strides = [1, 1]} : vector<16x32xf32> to vector<16x16xf32>
    %280 = tpu.concatenate %278, %279 in 0 : vector<8x16xf32>, vector<16x16xf32> -> vector<24x16xf32>
    %281 = vector.extract_strided_slice %173 {offsets = [0, 16], sizes = [8, 16], strides = [1, 1]} : vector<8x32xf32> to vector<8x16xf32>
    %282 = vector.extract_strided_slice %171 {offsets = [0, 16], sizes = [16, 16], strides = [1, 1]} : vector<16x32xf32> to vector<16x16xf32>
    %283 = tpu.concatenate %281, %282 in 0 : vector<8x16xf32>, vector<16x16xf32> -> vector<24x16xf32>
    %cst_79 = arith.constant dense<0.000000e+00> : vector<8x24xf32>
    %284 = tpu.matmul %277, %280, %cst_79 {dimension_numbers = #tpu.dot_dimension_numbers<[1], [1], [0], [0], [0, 0, 1, 0], [], []>} : vector<8x16xf32>, vector<24x16xf32>, vector<8x24xf32> -> vector<8x24xf32>
    %cst_80 = arith.constant dense<0.000000e+00> : vector<8x13xf32>
    %285 = tpu.matmul %277, %32, %cst_80 {dimension_numbers = #tpu.dot_dimension_numbers<[1], [0], [0], [1], [0, 0, 1, 1], [], []>} : vector<8x16xf32>, vector<16x13xf32>, vector<8x13xf32> -> vector<8x13xf32>
    %cst_81 = arith.constant 0.000000e+00 : f32
    %286 = vector.broadcast %cst_81 : f32 to vector<8x24xf32>
    %287 = vector.extract_strided_slice %285 {offsets = [0, 0], sizes = [8, 1], strides = [1, 1]} : vector<8x13xf32> to vector<8x1xf32>
    %cst_82 = arith.constant 0.000000e+00 : f32
    %288 = vector.shape_cast %287 : vector<8x1xf32> to vector<8x1xf32>
    %289 = vector.broadcast %288 : vector<8x1xf32> to vector<8x24xf32>
    %290 = vector.broadcast %cst_82 : f32 to vector<8x24xf32>
    %291 = arith.select %72, %289, %290 : vector<8x24xi1>, vector<8x24xf32>
    %292 = arith.addf %286, %291 : vector<8x24xf32>
    %293 = vector.extract_strided_slice %285 {offsets = [0, 1], sizes = [8, 1], strides = [1, 1]} : vector<8x13xf32> to vector<8x1xf32>
    %cst_83 = arith.constant 0.000000e+00 : f32
    %294 = vector.shape_cast %293 : vector<8x1xf32> to vector<8x1xf32>
    %295 = vector.broadcast %294 : vector<8x1xf32> to vector<8x24xf32>
    %296 = vector.broadcast %cst_83 : f32 to vector<8x24xf32>
    %297 = arith.select %86, %295, %296 : vector<8x24xi1>, vector<8x24xf32>
    %298 = arith.addf %292, %297 : vector<8x24xf32>
    %299 = vector.extract_strided_slice %285 {offsets = [0, 2], sizes = [8, 1], strides = [1, 1]} : vector<8x13xf32> to vector<8x1xf32>
    %cst_84 = arith.constant 0.000000e+00 : f32
    %300 = vector.shape_cast %299 : vector<8x1xf32> to vector<8x1xf32>
    %301 = vector.broadcast %300 : vector<8x1xf32> to vector<8x24xf32>
    %302 = vector.broadcast %cst_84 : f32 to vector<8x24xf32>
    %303 = arith.select %100, %301, %302 : vector<8x24xi1>, vector<8x24xf32>
    %304 = arith.addf %298, %303 : vector<8x24xf32>
    %305 = vector.extract_strided_slice %285 {offsets = [0, 3], sizes = [8, 1], strides = [1, 1]} : vector<8x13xf32> to vector<8x1xf32>
    %cst_85 = arith.constant 0.000000e+00 : f32
    %306 = vector.shape_cast %305 : vector<8x1xf32> to vector<8x1xf32>
    %307 = vector.broadcast %306 : vector<8x1xf32> to vector<8x24xf32>
    %308 = vector.broadcast %cst_85 : f32 to vector<8x24xf32>
    %309 = arith.select %114, %307, %308 : vector<8x24xi1>, vector<8x24xf32>
    %310 = arith.addf %304, %309 : vector<8x24xf32>
    %311 = vector.extract_strided_slice %285 {offsets = [0, 4], sizes = [8, 1], strides = [1, 1]} : vector<8x13xf32> to vector<8x1xf32>
    %cst_86 = arith.constant 0.000000e+00 : f32
    %312 = vector.shape_cast %311 : vector<8x1xf32> to vector<8x1xf32>
    %313 = vector.broadcast %312 : vector<8x1xf32> to vector<8x24xf32>
    %314 = vector.broadcast %cst_86 : f32 to vector<8x24xf32>
    %315 = arith.select %128, %313, %314 : vector<8x24xi1>, vector<8x24xf32>
    %316 = arith.addf %310, %315 : vector<8x24xf32>
    %317 = vector.extract_strided_slice %285 {offsets = [0, 5], sizes = [8, 1], strides = [1, 1]} : vector<8x13xf32> to vector<8x1xf32>
    %cst_87 = arith.constant 0.000000e+00 : f32
    %318 = vector.shape_cast %317 : vector<8x1xf32> to vector<8x1xf32>
    %319 = vector.broadcast %318 : vector<8x1xf32> to vector<8x24xf32>
    %320 = vector.broadcast %cst_87 : f32 to vector<8x24xf32>
    %321 = arith.select %133, %319, %320 : vector<8x24xi1>, vector<8x24xf32>
    %322 = arith.addf %316, %321 : vector<8x24xf32>
    %323 = vector.extract_strided_slice %285 {offsets = [0, 6], sizes = [8, 1], strides = [1, 1]} : vector<8x13xf32> to vector<8x1xf32>
    %cst_88 = arith.constant 0.000000e+00 : f32
    %324 = vector.shape_cast %323 : vector<8x1xf32> to vector<8x1xf32>
    %325 = vector.broadcast %324 : vector<8x1xf32> to vector<8x24xf32>
    %326 = vector.broadcast %cst_88 : f32 to vector<8x24xf32>
    %327 = arith.select %138, %325, %326 : vector<8x24xi1>, vector<8x24xf32>
    %328 = arith.addf %322, %327 : vector<8x24xf32>
    %329 = vector.extract_strided_slice %285 {offsets = [0, 7], sizes = [8, 1], strides = [1, 1]} : vector<8x13xf32> to vector<8x1xf32>
    %cst_89 = arith.constant 0.000000e+00 : f32
    %330 = vector.shape_cast %329 : vector<8x1xf32> to vector<8x1xf32>
    %331 = vector.broadcast %330 : vector<8x1xf32> to vector<8x24xf32>
    %332 = vector.broadcast %cst_89 : f32 to vector<8x24xf32>
    %333 = arith.select %143, %331, %332 : vector<8x24xi1>, vector<8x24xf32>
    %334 = arith.addf %328, %333 : vector<8x24xf32>
    %335 = vector.extract_strided_slice %285 {offsets = [0, 8], sizes = [8, 1], strides = [1, 1]} : vector<8x13xf32> to vector<8x1xf32>
    %cst_90 = arith.constant 0.000000e+00 : f32
    %336 = vector.shape_cast %335 : vector<8x1xf32> to vector<8x1xf32>
    %337 = vector.broadcast %336 : vector<8x1xf32> to vector<8x24xf32>
    %338 = vector.broadcast %cst_90 : f32 to vector<8x24xf32>
    %339 = arith.select %148, %337, %338 : vector<8x24xi1>, vector<8x24xf32>
    %340 = arith.addf %334, %339 : vector<8x24xf32>
    %341 = vector.extract_strided_slice %285 {offsets = [0, 9], sizes = [8, 1], strides = [1, 1]} : vector<8x13xf32> to vector<8x1xf32>
    %cst_91 = arith.constant 0.000000e+00 : f32
    %342 = vector.shape_cast %341 : vector<8x1xf32> to vector<8x1xf32>
    %343 = vector.broadcast %342 : vector<8x1xf32> to vector<8x24xf32>
    %344 = vector.broadcast %cst_91 : f32 to vector<8x24xf32>
    %345 = arith.select %153, %343, %344 : vector<8x24xi1>, vector<8x24xf32>
    %346 = arith.addf %340, %345 : vector<8x24xf32>
    %347 = vector.extract_strided_slice %285 {offsets = [0, 10], sizes = [8, 1], strides = [1, 1]} : vector<8x13xf32> to vector<8x1xf32>
    %cst_92 = arith.constant 0.000000e+00 : f32
    %348 = vector.shape_cast %347 : vector<8x1xf32> to vector<8x1xf32>
    %349 = vector.broadcast %348 : vector<8x1xf32> to vector<8x24xf32>
    %350 = vector.broadcast %cst_92 : f32 to vector<8x24xf32>
    %351 = arith.select %158, %349, %350 : vector<8x24xi1>, vector<8x24xf32>
    %352 = arith.addf %346, %351 : vector<8x24xf32>
    %353 = vector.extract_strided_slice %285 {offsets = [0, 11], sizes = [8, 1], strides = [1, 1]} : vector<8x13xf32> to vector<8x1xf32>
    %cst_93 = arith.constant 0.000000e+00 : f32
    %354 = vector.shape_cast %353 : vector<8x1xf32> to vector<8x1xf32>
    %355 = vector.broadcast %354 : vector<8x1xf32> to vector<8x24xf32>
    %356 = vector.broadcast %cst_93 : f32 to vector<8x24xf32>
    %357 = arith.select %163, %355, %356 : vector<8x24xi1>, vector<8x24xf32>
    %358 = arith.addf %352, %357 : vector<8x24xf32>
    %359 = vector.extract_strided_slice %285 {offsets = [0, 12], sizes = [8, 1], strides = [1, 1]} : vector<8x13xf32> to vector<8x1xf32>
    %cst_94 = arith.constant 0.000000e+00 : f32
    %360 = vector.shape_cast %359 : vector<8x1xf32> to vector<8x1xf32>
    %361 = vector.broadcast %360 : vector<8x1xf32> to vector<8x24xf32>
    %362 = vector.broadcast %cst_94 : f32 to vector<8x24xf32>
    %363 = arith.select %168, %361, %362 : vector<8x24xi1>, vector<8x24xf32>
    %364 = arith.addf %358, %363 : vector<8x24xf32>
    %365 = arith.addf %284, %364 : vector<8x24xf32>
    %cst_95 = arith.constant 2.500000e-01 : f32
    %366 = vector.broadcast %cst_95 : f32 to vector<8x24xf32>
    %367 = arith.mulf %365, %366 : vector<8x24xf32>
    %cst_96 = arith.constant -1.000000e+30 : f32
    %368 = vector.broadcast %cst_96 : f32 to vector<8x24xf32>
    %369 = arith.select %58, %367, %368 : vector<8x24xi1>, vector<8x24xf32>
    %cst_97 = arith.constant dense<0xFF800000> : vector<8xf32>
    %370 = vector.multi_reduction <maximumf>, %369, %cst_97 [1] : vector<8x24xf32> to vector<8xf32>
    %371 = vector.shape_cast %370 : vector<8xf32> to vector<8x1xf32>
    %372 = vector.broadcast %371 : vector<8x1xf32> to vector<8x24xf32>
    %373 = arith.subf %369, %372 : vector<8x24xf32>
    %374 = math.exp %373 : vector<8x24xf32>
    %cst_98 = arith.constant dense<0.000000e+00> : vector<8xf32>
    %375 = vector.multi_reduction <add>, %374, %cst_98 [1] : vector<8x24xf32> to vector<8xf32>
    %376 = vector.shape_cast %375 : vector<8xf32> to vector<8x1xf32>
    %377 = vector.broadcast %376 : vector<8x1xf32> to vector<8x24xf32>
    %378 = arith.divf %374, %377 : vector<8x24xf32>
    %cst_99 = arith.constant dense<0.000000e+00> : vector<8x16xf32>
    %379 = tpu.matmul %378, %283, %cst_99 {dimension_numbers = #tpu.dot_dimension_numbers<[1], [0], [0], [1], [0, 0, 1, 1], [], []>} : vector<8x24xf32>, vector<24x16xf32>, vector<8x16xf32> -> vector<8x16xf32>
    %380 = tpu.concatenate %276, %379 in 1 : vector<8x16xf32>, vector<8x16xf32> -> vector<8x32xf32>
    %381 = vector.extract_strided_slice %27 {offsets = [8, 0], sizes = [8, 32], strides = [1, 1]} : vector<16x32xf32> to vector<8x32xf32>
    %382 = vector.extract_strided_slice %28 {offsets = [16, 0], sizes = [16, 32], strides = [1, 1]} : vector<32x32xf32> to vector<16x32xf32>
    %383 = vector.extract_strided_slice %29 {offsets = [16, 0], sizes = [16, 32], strides = [1, 1]} : vector<32x32xf32> to vector<16x32xf32>
    %384 = vector.extract_strided_slice %30 {offsets = [8, 0], sizes = [8, 32], strides = [1, 1]} : vector<16x32xf32> to vector<8x32xf32>
    %385 = vector.extract_strided_slice %31 {offsets = [8, 0], sizes = [8, 32], strides = [1, 1]} : vector<16x32xf32> to vector<8x32xf32>
    %386 = vector.extract_strided_slice %381 {offsets = [0, 0], sizes = [8, 16], strides = [1, 1]} : vector<8x32xf32> to vector<8x16xf32>
    %387 = vector.extract_strided_slice %384 {offsets = [0, 0], sizes = [8, 16], strides = [1, 1]} : vector<8x32xf32> to vector<8x16xf32>
    %388 = vector.extract_strided_slice %382 {offsets = [0, 0], sizes = [16, 16], strides = [1, 1]} : vector<16x32xf32> to vector<16x16xf32>
    %389 = tpu.concatenate %387, %388 in 0 : vector<8x16xf32>, vector<16x16xf32> -> vector<24x16xf32>
    %390 = vector.extract_strided_slice %385 {offsets = [0, 0], sizes = [8, 16], strides = [1, 1]} : vector<8x32xf32> to vector<8x16xf32>
    %391 = vector.extract_strided_slice %383 {offsets = [0, 0], sizes = [16, 16], strides = [1, 1]} : vector<16x32xf32> to vector<16x16xf32>
    %392 = tpu.concatenate %390, %391 in 0 : vector<8x16xf32>, vector<16x16xf32> -> vector<24x16xf32>
    %cst_100 = arith.constant dense<0.000000e+00> : vector<8x24xf32>
    %393 = tpu.matmul %386, %389, %cst_100 {dimension_numbers = #tpu.dot_dimension_numbers<[1], [1], [0], [0], [0, 0, 1, 0], [], []>} : vector<8x16xf32>, vector<24x16xf32>, vector<8x24xf32> -> vector<8x24xf32>
    %cst_101 = arith.constant dense<0.000000e+00> : vector<8x13xf32>
    %394 = tpu.matmul %386, %32, %cst_101 {dimension_numbers = #tpu.dot_dimension_numbers<[1], [0], [0], [1], [0, 0, 1, 1], [], []>} : vector<8x16xf32>, vector<16x13xf32>, vector<8x13xf32> -> vector<8x13xf32>
    %cst_102 = arith.constant 0.000000e+00 : f32
    %395 = vector.broadcast %cst_102 : f32 to vector<8x24xf32>
    %396 = vector.extract_strided_slice %394 {offsets = [0, 0], sizes = [8, 1], strides = [1, 1]} : vector<8x13xf32> to vector<8x1xf32>
    %cst_103 = arith.constant 0.000000e+00 : f32
    %397 = vector.shape_cast %396 : vector<8x1xf32> to vector<8x1xf32>
    %398 = vector.broadcast %397 : vector<8x1xf32> to vector<8x24xf32>
    %399 = vector.broadcast %cst_103 : f32 to vector<8x24xf32>
    %400 = arith.select %72, %398, %399 : vector<8x24xi1>, vector<8x24xf32>
    %401 = arith.addf %395, %400 : vector<8x24xf32>
    %402 = vector.extract_strided_slice %394 {offsets = [0, 1], sizes = [8, 1], strides = [1, 1]} : vector<8x13xf32> to vector<8x1xf32>
    %cst_104 = arith.constant 0.000000e+00 : f32
    %403 = vector.shape_cast %402 : vector<8x1xf32> to vector<8x1xf32>
    %404 = vector.broadcast %403 : vector<8x1xf32> to vector<8x24xf32>
    %405 = vector.broadcast %cst_104 : f32 to vector<8x24xf32>
    %406 = arith.select %86, %404, %405 : vector<8x24xi1>, vector<8x24xf32>
    %407 = arith.addf %401, %406 : vector<8x24xf32>
    %408 = vector.extract_strided_slice %394 {offsets = [0, 2], sizes = [8, 1], strides = [1, 1]} : vector<8x13xf32> to vector<8x1xf32>
    %cst_105 = arith.constant 0.000000e+00 : f32
    %409 = vector.shape_cast %408 : vector<8x1xf32> to vector<8x1xf32>
    %410 = vector.broadcast %409 : vector<8x1xf32> to vector<8x24xf32>
    %411 = vector.broadcast %cst_105 : f32 to vector<8x24xf32>
    %412 = arith.select %100, %410, %411 : vector<8x24xi1>, vector<8x24xf32>
    %413 = arith.addf %407, %412 : vector<8x24xf32>
    %414 = vector.extract_strided_slice %394 {offsets = [0, 3], sizes = [8, 1], strides = [1, 1]} : vector<8x13xf32> to vector<8x1xf32>
    %cst_106 = arith.constant 0.000000e+00 : f32
    %415 = vector.shape_cast %414 : vector<8x1xf32> to vector<8x1xf32>
    %416 = vector.broadcast %415 : vector<8x1xf32> to vector<8x24xf32>
    %417 = vector.broadcast %cst_106 : f32 to vector<8x24xf32>
    %418 = arith.select %114, %416, %417 : vector<8x24xi1>, vector<8x24xf32>
    %419 = arith.addf %413, %418 : vector<8x24xf32>
    %420 = vector.extract_strided_slice %394 {offsets = [0, 4], sizes = [8, 1], strides = [1, 1]} : vector<8x13xf32> to vector<8x1xf32>
    %cst_107 = arith.constant 0.000000e+00 : f32
    %421 = vector.shape_cast %420 : vector<8x1xf32> to vector<8x1xf32>
    %422 = vector.broadcast %421 : vector<8x1xf32> to vector<8x24xf32>
    %423 = vector.broadcast %cst_107 : f32 to vector<8x24xf32>
    %424 = arith.select %128, %422, %423 : vector<8x24xi1>, vector<8x24xf32>
    %425 = arith.addf %419, %424 : vector<8x24xf32>
    %426 = vector.extract_strided_slice %394 {offsets = [0, 5], sizes = [8, 1], strides = [1, 1]} : vector<8x13xf32> to vector<8x1xf32>
    %cst_108 = arith.constant 0.000000e+00 : f32
    %427 = vector.shape_cast %426 : vector<8x1xf32> to vector<8x1xf32>
    %428 = vector.broadcast %427 : vector<8x1xf32> to vector<8x24xf32>
    %429 = vector.broadcast %cst_108 : f32 to vector<8x24xf32>
    %430 = arith.select %133, %428, %429 : vector<8x24xi1>, vector<8x24xf32>
    %431 = arith.addf %425, %430 : vector<8x24xf32>
    %432 = vector.extract_strided_slice %394 {offsets = [0, 6], sizes = [8, 1], strides = [1, 1]} : vector<8x13xf32> to vector<8x1xf32>
    %cst_109 = arith.constant 0.000000e+00 : f32
    %433 = vector.shape_cast %432 : vector<8x1xf32> to vector<8x1xf32>
    %434 = vector.broadcast %433 : vector<8x1xf32> to vector<8x24xf32>
    %435 = vector.broadcast %cst_109 : f32 to vector<8x24xf32>
    %436 = arith.select %138, %434, %435 : vector<8x24xi1>, vector<8x24xf32>
    %437 = arith.addf %431, %436 : vector<8x24xf32>
    %438 = vector.extract_strided_slice %394 {offsets = [0, 7], sizes = [8, 1], strides = [1, 1]} : vector<8x13xf32> to vector<8x1xf32>
    %cst_110 = arith.constant 0.000000e+00 : f32
    %439 = vector.shape_cast %438 : vector<8x1xf32> to vector<8x1xf32>
    %440 = vector.broadcast %439 : vector<8x1xf32> to vector<8x24xf32>
    %441 = vector.broadcast %cst_110 : f32 to vector<8x24xf32>
    %442 = arith.select %143, %440, %441 : vector<8x24xi1>, vector<8x24xf32>
    %443 = arith.addf %437, %442 : vector<8x24xf32>
    %444 = vector.extract_strided_slice %394 {offsets = [0, 8], sizes = [8, 1], strides = [1, 1]} : vector<8x13xf32> to vector<8x1xf32>
    %cst_111 = arith.constant 0.000000e+00 : f32
    %445 = vector.shape_cast %444 : vector<8x1xf32> to vector<8x1xf32>
    %446 = vector.broadcast %445 : vector<8x1xf32> to vector<8x24xf32>
    %447 = vector.broadcast %cst_111 : f32 to vector<8x24xf32>
    %448 = arith.select %148, %446, %447 : vector<8x24xi1>, vector<8x24xf32>
    %449 = arith.addf %443, %448 : vector<8x24xf32>
    %450 = vector.extract_strided_slice %394 {offsets = [0, 9], sizes = [8, 1], strides = [1, 1]} : vector<8x13xf32> to vector<8x1xf32>
    %cst_112 = arith.constant 0.000000e+00 : f32
    %451 = vector.shape_cast %450 : vector<8x1xf32> to vector<8x1xf32>
    %452 = vector.broadcast %451 : vector<8x1xf32> to vector<8x24xf32>
    %453 = vector.broadcast %cst_112 : f32 to vector<8x24xf32>
    %454 = arith.select %153, %452, %453 : vector<8x24xi1>, vector<8x24xf32>
    %455 = arith.addf %449, %454 : vector<8x24xf32>
    %456 = vector.extract_strided_slice %394 {offsets = [0, 10], sizes = [8, 1], strides = [1, 1]} : vector<8x13xf32> to vector<8x1xf32>
    %cst_113 = arith.constant 0.000000e+00 : f32
    %457 = vector.shape_cast %456 : vector<8x1xf32> to vector<8x1xf32>
    %458 = vector.broadcast %457 : vector<8x1xf32> to vector<8x24xf32>
    %459 = vector.broadcast %cst_113 : f32 to vector<8x24xf32>
    %460 = arith.select %158, %458, %459 : vector<8x24xi1>, vector<8x24xf32>
    %461 = arith.addf %455, %460 : vector<8x24xf32>
    %462 = vector.extract_strided_slice %394 {offsets = [0, 11], sizes = [8, 1], strides = [1, 1]} : vector<8x13xf32> to vector<8x1xf32>
    %cst_114 = arith.constant 0.000000e+00 : f32
    %463 = vector.shape_cast %462 : vector<8x1xf32> to vector<8x1xf32>
    %464 = vector.broadcast %463 : vector<8x1xf32> to vector<8x24xf32>
    %465 = vector.broadcast %cst_114 : f32 to vector<8x24xf32>
    %466 = arith.select %163, %464, %465 : vector<8x24xi1>, vector<8x24xf32>
    %467 = arith.addf %461, %466 : vector<8x24xf32>
    %468 = vector.extract_strided_slice %394 {offsets = [0, 12], sizes = [8, 1], strides = [1, 1]} : vector<8x13xf32> to vector<8x1xf32>
    %cst_115 = arith.constant 0.000000e+00 : f32
    %469 = vector.shape_cast %468 : vector<8x1xf32> to vector<8x1xf32>
    %470 = vector.broadcast %469 : vector<8x1xf32> to vector<8x24xf32>
    %471 = vector.broadcast %cst_115 : f32 to vector<8x24xf32>
    %472 = arith.select %168, %470, %471 : vector<8x24xi1>, vector<8x24xf32>
    %473 = arith.addf %467, %472 : vector<8x24xf32>
    %474 = arith.addf %393, %473 : vector<8x24xf32>
    %cst_116 = arith.constant 2.500000e-01 : f32
    %475 = vector.broadcast %cst_116 : f32 to vector<8x24xf32>
    %476 = arith.mulf %474, %475 : vector<8x24xf32>
    %cst_117 = arith.constant -1.000000e+30 : f32
    %477 = vector.broadcast %cst_117 : f32 to vector<8x24xf32>
    %478 = arith.select %58, %476, %477 : vector<8x24xi1>, vector<8x24xf32>
    %cst_118 = arith.constant dense<0xFF800000> : vector<8xf32>
    %479 = vector.multi_reduction <maximumf>, %478, %cst_118 [1] : vector<8x24xf32> to vector<8xf32>
    %480 = vector.shape_cast %479 : vector<8xf32> to vector<8x1xf32>
    %481 = vector.broadcast %480 : vector<8x1xf32> to vector<8x24xf32>
    %482 = arith.subf %478, %481 : vector<8x24xf32>
    %483 = math.exp %482 : vector<8x24xf32>
    %cst_119 = arith.constant dense<0.000000e+00> : vector<8xf32>
    %484 = vector.multi_reduction <add>, %483, %cst_119 [1] : vector<8x24xf32> to vector<8xf32>
    %485 = vector.shape_cast %484 : vector<8xf32> to vector<8x1xf32>
    %486 = vector.broadcast %485 : vector<8x1xf32> to vector<8x24xf32>
    %487 = arith.divf %483, %486 : vector<8x24xf32>
    %cst_120 = arith.constant dense<0.000000e+00> : vector<8x16xf32>
    %488 = tpu.matmul %487, %392, %cst_120 {dimension_numbers = #tpu.dot_dimension_numbers<[1], [0], [0], [1], [0, 0, 1, 1], [], []>} : vector<8x24xf32>, vector<24x16xf32>, vector<8x16xf32> -> vector<8x16xf32>
    %489 = vector.extract_strided_slice %381 {offsets = [0, 16], sizes = [8, 16], strides = [1, 1]} : vector<8x32xf32> to vector<8x16xf32>
    %490 = vector.extract_strided_slice %384 {offsets = [0, 16], sizes = [8, 16], strides = [1, 1]} : vector<8x32xf32> to vector<8x16xf32>
    %491 = vector.extract_strided_slice %382 {offsets = [0, 16], sizes = [16, 16], strides = [1, 1]} : vector<16x32xf32> to vector<16x16xf32>
    %492 = tpu.concatenate %490, %491 in 0 : vector<8x16xf32>, vector<16x16xf32> -> vector<24x16xf32>
    %493 = vector.extract_strided_slice %385 {offsets = [0, 16], sizes = [8, 16], strides = [1, 1]} : vector<8x32xf32> to vector<8x16xf32>
    %494 = vector.extract_strided_slice %383 {offsets = [0, 16], sizes = [16, 16], strides = [1, 1]} : vector<16x32xf32> to vector<16x16xf32>
    %495 = tpu.concatenate %493, %494 in 0 : vector<8x16xf32>, vector<16x16xf32> -> vector<24x16xf32>
    %cst_121 = arith.constant dense<0.000000e+00> : vector<8x24xf32>
    %496 = tpu.matmul %489, %492, %cst_121 {dimension_numbers = #tpu.dot_dimension_numbers<[1], [1], [0], [0], [0, 0, 1, 0], [], []>} : vector<8x16xf32>, vector<24x16xf32>, vector<8x24xf32> -> vector<8x24xf32>
    %cst_122 = arith.constant dense<0.000000e+00> : vector<8x13xf32>
    %497 = tpu.matmul %489, %32, %cst_122 {dimension_numbers = #tpu.dot_dimension_numbers<[1], [0], [0], [1], [0, 0, 1, 1], [], []>} : vector<8x16xf32>, vector<16x13xf32>, vector<8x13xf32> -> vector<8x13xf32>
    %cst_123 = arith.constant 0.000000e+00 : f32
    %498 = vector.broadcast %cst_123 : f32 to vector<8x24xf32>
    %499 = vector.extract_strided_slice %497 {offsets = [0, 0], sizes = [8, 1], strides = [1, 1]} : vector<8x13xf32> to vector<8x1xf32>
    %cst_124 = arith.constant 0.000000e+00 : f32
    %500 = vector.shape_cast %499 : vector<8x1xf32> to vector<8x1xf32>
    %501 = vector.broadcast %500 : vector<8x1xf32> to vector<8x24xf32>
    %502 = vector.broadcast %cst_124 : f32 to vector<8x24xf32>
    %503 = arith.select %72, %501, %502 : vector<8x24xi1>, vector<8x24xf32>
    %504 = arith.addf %498, %503 : vector<8x24xf32>
    %505 = vector.extract_strided_slice %497 {offsets = [0, 1], sizes = [8, 1], strides = [1, 1]} : vector<8x13xf32> to vector<8x1xf32>
    %cst_125 = arith.constant 0.000000e+00 : f32
    %506 = vector.shape_cast %505 : vector<8x1xf32> to vector<8x1xf32>
    %507 = vector.broadcast %506 : vector<8x1xf32> to vector<8x24xf32>
    %508 = vector.broadcast %cst_125 : f32 to vector<8x24xf32>
    %509 = arith.select %86, %507, %508 : vector<8x24xi1>, vector<8x24xf32>
    %510 = arith.addf %504, %509 : vector<8x24xf32>
    %511 = vector.extract_strided_slice %497 {offsets = [0, 2], sizes = [8, 1], strides = [1, 1]} : vector<8x13xf32> to vector<8x1xf32>
    %cst_126 = arith.constant 0.000000e+00 : f32
    %512 = vector.shape_cast %511 : vector<8x1xf32> to vector<8x1xf32>
    %513 = vector.broadcast %512 : vector<8x1xf32> to vector<8x24xf32>
    %514 = vector.broadcast %cst_126 : f32 to vector<8x24xf32>
    %515 = arith.select %100, %513, %514 : vector<8x24xi1>, vector<8x24xf32>
    %516 = arith.addf %510, %515 : vector<8x24xf32>
    %517 = vector.extract_strided_slice %497 {offsets = [0, 3], sizes = [8, 1], strides = [1, 1]} : vector<8x13xf32> to vector<8x1xf32>
    %cst_127 = arith.constant 0.000000e+00 : f32
    %518 = vector.shape_cast %517 : vector<8x1xf32> to vector<8x1xf32>
    %519 = vector.broadcast %518 : vector<8x1xf32> to vector<8x24xf32>
    %520 = vector.broadcast %cst_127 : f32 to vector<8x24xf32>
    %521 = arith.select %114, %519, %520 : vector<8x24xi1>, vector<8x24xf32>
    %522 = arith.addf %516, %521 : vector<8x24xf32>
    %523 = vector.extract_strided_slice %497 {offsets = [0, 4], sizes = [8, 1], strides = [1, 1]} : vector<8x13xf32> to vector<8x1xf32>
    %cst_128 = arith.constant 0.000000e+00 : f32
    %524 = vector.shape_cast %523 : vector<8x1xf32> to vector<8x1xf32>
    %525 = vector.broadcast %524 : vector<8x1xf32> to vector<8x24xf32>
    %526 = vector.broadcast %cst_128 : f32 to vector<8x24xf32>
    %527 = arith.select %128, %525, %526 : vector<8x24xi1>, vector<8x24xf32>
    %528 = arith.addf %522, %527 : vector<8x24xf32>
    %529 = vector.extract_strided_slice %497 {offsets = [0, 5], sizes = [8, 1], strides = [1, 1]} : vector<8x13xf32> to vector<8x1xf32>
    %cst_129 = arith.constant 0.000000e+00 : f32
    %530 = vector.shape_cast %529 : vector<8x1xf32> to vector<8x1xf32>
    %531 = vector.broadcast %530 : vector<8x1xf32> to vector<8x24xf32>
    %532 = vector.broadcast %cst_129 : f32 to vector<8x24xf32>
    %533 = arith.select %133, %531, %532 : vector<8x24xi1>, vector<8x24xf32>
    %534 = arith.addf %528, %533 : vector<8x24xf32>
    %535 = vector.extract_strided_slice %497 {offsets = [0, 6], sizes = [8, 1], strides = [1, 1]} : vector<8x13xf32> to vector<8x1xf32>
    %cst_130 = arith.constant 0.000000e+00 : f32
    %536 = vector.shape_cast %535 : vector<8x1xf32> to vector<8x1xf32>
    %537 = vector.broadcast %536 : vector<8x1xf32> to vector<8x24xf32>
    %538 = vector.broadcast %cst_130 : f32 to vector<8x24xf32>
    %539 = arith.select %138, %537, %538 : vector<8x24xi1>, vector<8x24xf32>
    %540 = arith.addf %534, %539 : vector<8x24xf32>
    %541 = vector.extract_strided_slice %497 {offsets = [0, 7], sizes = [8, 1], strides = [1, 1]} : vector<8x13xf32> to vector<8x1xf32>
    %cst_131 = arith.constant 0.000000e+00 : f32
    %542 = vector.shape_cast %541 : vector<8x1xf32> to vector<8x1xf32>
    %543 = vector.broadcast %542 : vector<8x1xf32> to vector<8x24xf32>
    %544 = vector.broadcast %cst_131 : f32 to vector<8x24xf32>
    %545 = arith.select %143, %543, %544 : vector<8x24xi1>, vector<8x24xf32>
    %546 = arith.addf %540, %545 : vector<8x24xf32>
    %547 = vector.extract_strided_slice %497 {offsets = [0, 8], sizes = [8, 1], strides = [1, 1]} : vector<8x13xf32> to vector<8x1xf32>
    %cst_132 = arith.constant 0.000000e+00 : f32
    %548 = vector.shape_cast %547 : vector<8x1xf32> to vector<8x1xf32>
    %549 = vector.broadcast %548 : vector<8x1xf32> to vector<8x24xf32>
    %550 = vector.broadcast %cst_132 : f32 to vector<8x24xf32>
    %551 = arith.select %148, %549, %550 : vector<8x24xi1>, vector<8x24xf32>
    %552 = arith.addf %546, %551 : vector<8x24xf32>
    %553 = vector.extract_strided_slice %497 {offsets = [0, 9], sizes = [8, 1], strides = [1, 1]} : vector<8x13xf32> to vector<8x1xf32>
    %cst_133 = arith.constant 0.000000e+00 : f32
    %554 = vector.shape_cast %553 : vector<8x1xf32> to vector<8x1xf32>
    %555 = vector.broadcast %554 : vector<8x1xf32> to vector<8x24xf32>
    %556 = vector.broadcast %cst_133 : f32 to vector<8x24xf32>
    %557 = arith.select %153, %555, %556 : vector<8x24xi1>, vector<8x24xf32>
    %558 = arith.addf %552, %557 : vector<8x24xf32>
    %559 = vector.extract_strided_slice %497 {offsets = [0, 10], sizes = [8, 1], strides = [1, 1]} : vector<8x13xf32> to vector<8x1xf32>
    %cst_134 = arith.constant 0.000000e+00 : f32
    %560 = vector.shape_cast %559 : vector<8x1xf32> to vector<8x1xf32>
    %561 = vector.broadcast %560 : vector<8x1xf32> to vector<8x24xf32>
    %562 = vector.broadcast %cst_134 : f32 to vector<8x24xf32>
    %563 = arith.select %158, %561, %562 : vector<8x24xi1>, vector<8x24xf32>
    %564 = arith.addf %558, %563 : vector<8x24xf32>
    %565 = vector.extract_strided_slice %497 {offsets = [0, 11], sizes = [8, 1], strides = [1, 1]} : vector<8x13xf32> to vector<8x1xf32>
    %cst_135 = arith.constant 0.000000e+00 : f32
    %566 = vector.shape_cast %565 : vector<8x1xf32> to vector<8x1xf32>
    %567 = vector.broadcast %566 : vector<8x1xf32> to vector<8x24xf32>
    %568 = vector.broadcast %cst_135 : f32 to vector<8x24xf32>
    %569 = arith.select %163, %567, %568 : vector<8x24xi1>, vector<8x24xf32>
    %570 = arith.addf %564, %569 : vector<8x24xf32>
    %571 = vector.extract_strided_slice %497 {offsets = [0, 12], sizes = [8, 1], strides = [1, 1]} : vector<8x13xf32> to vector<8x1xf32>
    %cst_136 = arith.constant 0.000000e+00 : f32
    %572 = vector.shape_cast %571 : vector<8x1xf32> to vector<8x1xf32>
    %573 = vector.broadcast %572 : vector<8x1xf32> to vector<8x24xf32>
    %574 = vector.broadcast %cst_136 : f32 to vector<8x24xf32>
    %575 = arith.select %168, %573, %574 : vector<8x24xi1>, vector<8x24xf32>
    %576 = arith.addf %570, %575 : vector<8x24xf32>
    %577 = arith.addf %496, %576 : vector<8x24xf32>
    %cst_137 = arith.constant 2.500000e-01 : f32
    %578 = vector.broadcast %cst_137 : f32 to vector<8x24xf32>
    %579 = arith.mulf %577, %578 : vector<8x24xf32>
    %cst_138 = arith.constant -1.000000e+30 : f32
    %580 = vector.broadcast %cst_138 : f32 to vector<8x24xf32>
    %581 = arith.select %58, %579, %580 : vector<8x24xi1>, vector<8x24xf32>
    %cst_139 = arith.constant dense<0xFF800000> : vector<8xf32>
    %582 = vector.multi_reduction <maximumf>, %581, %cst_139 [1] : vector<8x24xf32> to vector<8xf32>
    %583 = vector.shape_cast %582 : vector<8xf32> to vector<8x1xf32>
    %584 = vector.broadcast %583 : vector<8x1xf32> to vector<8x24xf32>
    %585 = arith.subf %581, %584 : vector<8x24xf32>
    %586 = math.exp %585 : vector<8x24xf32>
    %cst_140 = arith.constant dense<0.000000e+00> : vector<8xf32>
    %587 = vector.multi_reduction <add>, %586, %cst_140 [1] : vector<8x24xf32> to vector<8xf32>
    %588 = vector.shape_cast %587 : vector<8xf32> to vector<8x1xf32>
    %589 = vector.broadcast %588 : vector<8x1xf32> to vector<8x24xf32>
    %590 = arith.divf %586, %589 : vector<8x24xf32>
    %cst_141 = arith.constant dense<0.000000e+00> : vector<8x16xf32>
    %591 = tpu.matmul %590, %495, %cst_141 {dimension_numbers = #tpu.dot_dimension_numbers<[1], [0], [0], [1], [0, 0, 1, 1], [], []>} : vector<8x24xf32>, vector<24x16xf32>, vector<8x16xf32> -> vector<8x16xf32>
    %592 = tpu.concatenate %488, %591 in 1 : vector<8x16xf32>, vector<8x16xf32> -> vector<8x32xf32>
    %593 = tpu.concatenate %380, %592 in 0 : vector<8x32xf32>, vector<8x32xf32> -> vector<16x32xf32>
    %c0_142 = arith.constant 0 : index
    %c0_143 = arith.constant 0 : index
    %594 = vector.load %arg2[%c0_142, %c0_143] : memref<32x32xf32, #tpu.memory_space<vmem>>, vector<32x32xf32>
    %cst_144 = arith.constant dense<0.000000e+00> : vector<16x32xf32>
    %595 = tpu.matmul %593, %594, %cst_144 {dimension_numbers = #tpu.dot_dimension_numbers<[1], [1], [0], [0], [0, 0, 1, 0], [], []>} : vector<16x32xf32>, vector<32x32xf32>, vector<16x32xf32> -> vector<16x32xf32>
    %596 = vector.extract_strided_slice %0 {offsets = [0, 0], sizes = [16, 32], strides = [1, 1]} : vector<64x32xf32> to vector<16x32xf32>
    %597 = arith.addf %596, %595 : vector<16x32xf32>
    %cst_145 = arith.constant dense<0.000000e+00> : vector<16xf32>
    %598 = vector.multi_reduction <add>, %597, %cst_145 [1] : vector<16x32xf32> to vector<16xf32>
    %599 = vector.shape_cast %598 : vector<16xf32> to vector<16x1xf32>
    %cst_146 = arith.constant 3.200000e+01 : f32
    %600 = vector.broadcast %cst_146 : f32 to vector<16x1xf32>
    %601 = arith.divf %599, %600 : vector<16x1xf32>
    %602 = vector.broadcast %601 : vector<16x1xf32> to vector<16x32xf32>
    %603 = arith.subf %597, %602 : vector<16x32xf32>
    %604 = arith.mulf %603, %603 : vector<16x32xf32>
    %cst_147 = arith.constant dense<0.000000e+00> : vector<16xf32>
    %605 = vector.multi_reduction <add>, %604, %cst_147 [1] : vector<16x32xf32> to vector<16xf32>
    %606 = vector.shape_cast %605 : vector<16xf32> to vector<16x1xf32>
    %cst_148 = arith.constant 3.200000e+01 : f32
    %607 = vector.broadcast %cst_148 : f32 to vector<16x1xf32>
    %608 = arith.divf %606, %607 : vector<16x1xf32>
    %cst_149 = arith.constant 9.99999974E-6 : f32
    %609 = vector.broadcast %cst_149 : f32 to vector<16x1xf32>
    %610 = arith.addf %608, %609 : vector<16x1xf32>
    %611 = math.rsqrt %610 : vector<16x1xf32>
    %612 = vector.broadcast %611 : vector<16x1xf32> to vector<16x32xf32>
    %613 = arith.mulf %603, %612 : vector<16x32xf32>
    %614 = vector.broadcast %3 : vector<1x32xf32> to vector<16x32xf32>
    %615 = arith.mulf %613, %614 : vector<16x32xf32>
    %616 = vector.broadcast %4 : vector<1x32xf32> to vector<16x32xf32>
    %617 = arith.addf %615, %616 : vector<16x32xf32>
    %c0_150 = arith.constant 0 : index
    %c0_151 = arith.constant 0 : index
    %618 = vector.load %arg4[%c0_150, %c0_151] : memref<64x32xf32, #tpu.memory_space<vmem>>, vector<64x32xf32>
    %cst_152 = arith.constant dense<0.000000e+00> : vector<16x64xf32>
    %619 = tpu.matmul %617, %618, %cst_152 {dimension_numbers = #tpu.dot_dimension_numbers<[1], [1], [0], [0], [0, 0, 1, 0], [], []>} : vector<16x32xf32>, vector<64x32xf32>, vector<16x64xf32> -> vector<16x64xf32>
    %c0_153 = arith.constant 0 : index
    %c0_154 = arith.constant 0 : index
    %620 = vector.load %arg5[%c0_153, %c0_154] : memref<1x64xf32, #tpu.memory_space<vmem>>, vector<1x64xf32>
    %621 = vector.broadcast %620 : vector<1x64xf32> to vector<16x64xf32>
    %622 = arith.addf %619, %621 : vector<16x64xf32>
    %cst_155 = arith.constant 0.000000e+00 : f32
    %623 = vector.broadcast %cst_155 : f32 to vector<16x64xf32>
    %624 = arith.maximumf %622, %623 : vector<16x64xf32>
    %c0_156 = arith.constant 0 : index
    %c0_157 = arith.constant 0 : index
    %625 = vector.load %arg6[%c0_156, %c0_157] : memref<32x64xf32, #tpu.memory_space<vmem>>, vector<32x64xf32>
    %cst_158 = arith.constant dense<0.000000e+00> : vector<16x32xf32>
    %626 = tpu.matmul %624, %625, %cst_158 {dimension_numbers = #tpu.dot_dimension_numbers<[1], [1], [0], [0], [0, 0, 1, 0], [], []>} : vector<16x64xf32>, vector<32x64xf32>, vector<16x32xf32> -> vector<16x32xf32>
    %c0_159 = arith.constant 0 : index
    %c0_160 = arith.constant 0 : index
    %627 = vector.load %arg7[%c0_159, %c0_160] : memref<1x32xf32, #tpu.memory_space<vmem>>, vector<1x32xf32>
    %628 = vector.broadcast %627 : vector<1x32xf32> to vector<16x32xf32>
    %629 = arith.addf %626, %628 : vector<16x32xf32>
    %630 = arith.addf %597, %629 : vector<16x32xf32>
    %c0_161 = arith.constant 0 : index
    %c0_162 = arith.constant 0 : index
    %631 = vector.load %arg12[%c0_161, %c0_162] : memref<16x32xf32, #tpu.memory_space<vmem>>, vector<16x32xf32>
    tpu.vector_store %arg12[%c0_161, %c0_162], %630 {strides = array<i32>} : memref<16x32xf32, #tpu.memory_space<vmem>>, vector<16x32xf32>,
    return
  }
}

</mosaic_0001>

<llo_original>
// kernel: tpu_custom_call.1
$region0: #{tpu_custom_call.1}
  #allocation0 [shape = 'u32[]', space=smem, size = 0x4, offset = 0x4, fixed_abs, tag = 'smem constant byte address 0x4 - core index']
  #allocation1 [shape = 'u32[72,128]{1,0:T(1,128)}', space=vmem, size = 0x9000, scoped, tag = 'internal scratch']
  %s0 = inlined_call_operand.vmem [shape: f32[64,32], index: 0, kind: input, shape index: {}]
  %s1 = inlined_call_operand.vmem [shape: f32[96,32], index: 1, kind: input, shape index: {}]
  %s2 = inlined_call_operand.vmem [shape: f32[32,32], index: 2, kind: input, shape index: {}]
  %s3 = inlined_call_operand.vmem [shape: f32[16,13], index: 3, kind: input, shape index: {}]
  %s4 = inlined_call_operand.vmem [shape: f32[64,32], index: 4, kind: input, shape index: {}]
  %s5 = inlined_call_operand.vmem [shape: f32[1,64], index: 5, kind: input, shape index: {}]
  %s6 = inlined_call_operand.vmem [shape: f32[32,64], index: 6, kind: input, shape index: {}]
  %s7 = inlined_call_operand.vmem [shape: f32[1,32], index: 7, kind: input, shape index: {}]
  %s8 = inlined_call_operand.vmem [shape: f32[1,32], index: 8, kind: input, shape index: {}]
  %s9 = inlined_call_operand.vmem [shape: f32[1,32], index: 9, kind: input, shape index: {}]
  %s10 = inlined_call_operand.vmem [shape: f32[1,32], index: 10, kind: input, shape index: {}]
  %s11 = inlined_call_operand.vmem [shape: f32[1,32], index: 11, kind: input, shape index: {}]
  %s12 = inlined_call_operand.hbm [shape: f32[16,32], index: 12, kind: output, shape index: {}]
  %s13 = sld [smem:[#allocation0]]
  $region58: #{tpu_custom_call.1} parent=0
    _
  %s15 = ssub.s32 1, %s13
  %s16 = scalar_select 0, %s15, %s13
  $region1: #{tpu_custom_call.1} parent=0
    #allocation2 [shape = 'u8[8192]{0}', space=vmem, size = 0x2000, scoped, tag = 'output window, operand 0, single buffered']
    #allocation3 [shape = 's32[1]{0}', space=sflag, size = 0x4, scoped, tag = 'scoped memory for tpu_custom_call.1']
    %17 = vsyncpa [#allocation3], 0
    // Predicated region
    $region2: #{tpu_custom_call.1} parent=1 // pred_check
      _
    $region3: #{tpu_custom_call.1} parent=1 // pred_check_branch
      %19 = sbr.rel (0) target = $region5
    $region4: #{tpu_custom_call.1} parent=1 // pred_region
      _
    $region5: #{tpu_custom_call.1} parent=1 // pred_fallthru
      _
    // Predicated region
    $region6: #{tpu_custom_call.1} parent=1 // pred_check
      _
    $region7: #{tpu_custom_call.1} parent=1 // pred_check_branch
      %21 = sbr.rel (0) target = $region9
    $region8: #{tpu_custom_call.1} parent=1 // pred_region
      _
    $region9: #{tpu_custom_call.1} parent=1 // pred_fallthru
      _
    // Predicated region
    $region10: #{tpu_custom_call.1} parent=1 // pred_check
      _
    $region11: #{tpu_custom_call.1} parent=1 // pred_check_branch
      %23 = sbr.rel (0) target = $region13
    $region12: #{tpu_custom_call.1} parent=1 // pred_region
      _
    $region13: #{tpu_custom_call.1} parent=1 // pred_fallthru
      _
    // Predicated region
    $region14: #{tpu_custom_call.1} parent=1 // pred_check
      _
    $region15: #{tpu_custom_call.1} parent=1 // pred_check_branch
      %25 = sbr.rel (0) target = $region17
    $region16: #{tpu_custom_call.1} parent=1 // pred_region
      _
    $region17: #{tpu_custom_call.1} parent=1 // pred_fallthru
      _
    // Predicated region
    $region18: #{tpu_custom_call.1} parent=1 // pred_check
      _
    $region19: #{tpu_custom_call.1} parent=1 // pred_check_branch
      %27 = sbr.rel (0) target = $region21
    $region20: #{tpu_custom_call.1} parent=1 // pred_region
      _
    $region21: #{tpu_custom_call.1} parent=1 // pred_fallthru
      _
    // Predicated region
    $region22: #{tpu_custom_call.1} parent=1 // pred_check
      _
    $region23: #{tpu_custom_call.1} parent=1 // pred_check_branch
      %29 = sbr.rel (0) target = $region25
    $region24: #{tpu_custom_call.1} parent=1 // pred_region
      _
    $region25: #{tpu_custom_call.1} parent=1 // pred_fallthru
      _
    // Predicated region
    $region26: #{tpu_custom_call.1} parent=1 // pred_check
      _
    $region27: #{tpu_custom_call.1} parent=1 // pred_check_branch
      %31 = sbr.rel (0) target = $region29
    $region28: #{tpu_custom_call.1} parent=1 // pred_region
      _
    $region29: #{tpu_custom_call.1} parent=1 // pred_fallthru
      _
    // Predicated region
    $region30: #{tpu_custom_call.1} parent=1 // pred_check
      _
    $region31: #{tpu_custom_call.1} parent=1 // pred_check_branch
      %33 = sbr.rel (0) target = $region33
    $region32: #{tpu_custom_call.1} parent=1 // pred_region
      _
    $region33: #{tpu_custom_call.1} parent=1 // pred_fallthru
      _
    // Predicated region
    $region34: #{tpu_custom_call.1} parent=1 // pred_check
      _
    $region35: #{tpu_custom_call.1} parent=1 // pred_check_branch
      %35 = sbr.rel (0) target = $region37
    $region36: #{tpu_custom_call.1} parent=1 // pred_region
      _
    $region37: #{tpu_custom_call.1} parent=1 // pred_fallthru
      _
    // Predicated region
    $region38: #{tpu_custom_call.1} parent=1 // pred_check
      _
    $region39: #{tpu_custom_call.1} parent=1 // pred_check_branch
      %37 = sbr.rel (0) target = $region41
    $region40: #{tpu_custom_call.1} parent=1 // pred_region
      _
    $region41: #{tpu_custom_call.1} parent=1 // pred_fallthru
      _
    // Predicated region
    $region42: #{tpu_custom_call.1} parent=1 // pred_check
      _
    $region43: #{tpu_custom_call.1} parent=1 // pred_check_branch
      %39 = sbr.rel (0) target = $region45
    $region44: #{tpu_custom_call.1} parent=1 // pred_region
      _
    $region45: #{tpu_custom_call.1} parent=1 // pred_fallthru
      _
    // Predicated region
    $region46: #{tpu_custom_call.1} parent=1 // pred_check
      _
    $region47: #{tpu_custom_call.1} parent=1 // pred_check_branch
      %41 = sbr.rel (0) target = $region49
    $region48: #{tpu_custom_call.1} parent=1 // pred_region
      _
    $region49: #{tpu_custom_call.1} parent=1 // pred_fallthru
      _
    %v42 = vld [vmem:[%s0] sm:$0xff]
    %v43 = vld [vmem:[%s0 + $0x8] sm:$0xff]
    %v44 = vld [vmem:[%s0 + $0x10] sm:$0xff]
    %v45 = vld [vmem:[%s0 + $0x18] sm:$0xff]
    %v46 = vld [vmem:[%s0 + $0x20] sm:$0xff]
    %v47 = vld [vmem:[%s0 + $0x28] sm:$0xff]
    %v48 = vld [vmem:[%s0 + $0x30] sm:$0xff]
    %v49 = vld [vmem:[%s0 + $0x38] sm:$0xff]
    %v50 = vld [vmem:[%s8] sm:$0x1]
    %v51 = vld [vmem:[%s9] sm:$0x1]
    %v52 = vld [vmem:[%s10] sm:$0x1]
    %v53 = vld [vmem:[%s11] sm:$0x1]
    %vm54 = vcmask 261120
    %v55 = vsel %vm54, %v42, 0.0
    %56 = vadd.xlane.f32.xlu0 %v55
    %v57 = vpop.xlane.xlu0 %56
    %v58 = vsel %vm54, %v43, 0.0
    %59 = vadd.xlane.f32.xlu0 %v58
    %v60 = vpop.xlane.xlu0 %59
    %v61 = vsel %vm54, %v44, 0.0
    %62 = vadd.xlane.f32.xlu0 %v61
    %v63 = vpop.xlane.xlu0 %62
    %v64 = vsel %vm54, %v45, 0.0
    %65 = vadd.xlane.f32.xlu0 %v64
    %v66 = vpop.xlane.xlu0 %65
    %v67 = vsel %vm54, %v46, 0.0
    %68 = vadd.xlane.f32.xlu0 %v67
    %v69 = vpop.xlane.xlu0 %68
    %v70 = vsel %vm54, %v47, 0.0
    %71 = vadd.xlane.f32.xlu0 %v70
    %v72 = vpop.xlane.xlu0 %71
    %v73 = vsel %vm54, %v48, 0.0
    %74 = vadd.xlane.f32.xlu0 %v73
    %v75 = vpop.xlane.xlu0 %74
    %v76 = vsel %vm54, %v49, 0.0
    %77 = vadd.xlane.f32.xlu0 %v76
    %v78 = vpop.xlane.xlu0 %77
    %v79 = vrcp.pop 32.0
    %v80 = vmul.f32 32.0, %v79
    %v81 = vsub.f32 1.0, %v80
    %v82 = vmul.f32 %v79, %v81
    %v83 = vadd.f32 %v79, %v82
    %vm84 = vweird.f32 %v79
    %v85 = vsel %vm84, %v79, %v83
    %v86 = vmul.f32 %v57, %v85
    %v87 = vmul.f32 %v60, %v85
    %v88 = vmul.f32 %v63, %v85
    %v89 = vmul.f32 %v66, %v85
    %v90 = vmul.f32 %v69, %v85
    %v91 = vmul.f32 %v72, %v85
    %v92 = vmul.f32 %v75, %v85
    %v93 = vmul.f32 %v78, %v85
    %v94 = vsub.f32 %v42, %v86
    %v95 = vsub.f32 %v43, %v87
    %v96 = vsub.f32 %v44, %v88
    %v97 = vsub.f32 %v45, %v89
    %v98 = vsub.f32 %v46, %v90
    %v99 = vsub.f32 %v47, %v91
    %v100 = vsub.f32 %v48, %v92
    %v101 = vsub.f32 %v49, %v93
    %v102 = vmul.f32 %v94, %v94
    %v103 = vmul.f32 %v95, %v95
    %v104 = vmul.f32 %v96, %v96
    %v105 = vmul.f32 %v97, %v97
    %v106 = vmul.f32 %v98, %v98
    %v107 = vmul.f32 %v99, %v99
    %v108 = vmul.f32 %v100, %v100
    %v109 = vmul.f32 %v101, %v101
    %v110 = vsel %vm54, %v102, 0.0
    %111 = vadd.xlane.f32.xlu0 %v110
    %v112 = vpop.xlane.xlu0 %111
    %v113 = vsel %vm54, %v103, 0.0
    %114 = vadd.xlane.f32.xlu0 %v113
    %v115 = vpop.xlane.xlu0 %114
    %v116 = vsel %vm54, %v104, 0.0
    %117 = vadd.xlane.f32.xlu0 %v116
    %v118 = vpop.xlane.xlu0 %117
    %v119 = vsel %vm54, %v105, 0.0
    %120 = vadd.xlane.f32.xlu0 %v119
    %v121 = vpop.xlane.xlu0 %120
    %v122 = vsel %vm54, %v106, 0.0
    %123 = vadd.xlane.f32.xlu0 %v122
    %v124 = vpop.xlane.xlu0 %123
    %v125 = vsel %vm54, %v107, 0.0
    %126 = vadd.xlane.f32.xlu0 %v125
    %v127 = vpop.xlane.xlu0 %126
    %v128 = vsel %vm54, %v108, 0.0
    %129 = vadd.xlane.f32.xlu0 %v128
    %v130 = vpop.xlane.xlu0 %129
    %v131 = vsel %vm54, %v109, 0.0
    %132 = vadd.xlane.f32.xlu0 %v131
    %v133 = vpop.xlane.xlu0 %132
    %v134 = vmul.f32 %v112, %v85
    %v135 = vmul.f32 %v115, %v85
    %v136 = vmul.f32 %v118, %v85
    %v137 = vmul.f32 %v121, %v85
    %v138 = vmul.f32 %v124, %v85
    %v139 = vmul.f32 %v127, %v85
    %v140 = vmul.f32 %v130, %v85
    %v141 = vmul.f32 %v133, %v85
    %v142 = vadd.f32 %v134, 1e-05
    %v143 = vadd.f32 %v135, 1e-05
    %v144 = vadd.f32 %v136, 1e-05
    %v145 = vadd.f32 %v137, 1e-05
    %v146 = vadd.f32 %v138, 1e-05
    %v147 = vadd.f32 %v139, 1e-05
    %v148 = vadd.f32 %v140, 1e-05
    %v149 = vadd.f32 %v141, 1e-05
    %v150 = vrsqrt.pop %v142
    %v151 = vmul.f32 %v150, %v142
    %v152 = vmul.f32 %v151, %v150
    %v153 = vmul.f32 0.5, %v152
    %v154 = vsub.f32 1.5, %v153
    %v155 = vmul.f32 %v150, %v154
    %vm156 = vweird.f32 %v142
    %vm157 = vweird.f32 %v150
    %vm158 = vmor %vm156, %vm157
    %v159 = vsel %vm158, %v150, %v155
    %v160 = vrsqrt.pop %v143
    %v161 = vmul.f32 %v160, %v143
    %v162 = vmul.f32 %v161, %v160
    %v163 = vmul.f32 0.5, %v162
    %v164 = vsub.f32 1.5, %v163
    %v165 = vmul.f32 %v160, %v164
    %vm166 = vweird.f32 %v143
    %vm167 = vweird.f32 %v160
    %vm168 = vmor %vm166, %vm167
    %v169 = vsel %vm168, %v160, %v165
    %v170 = vrsqrt.pop %v144
    %v171 = vmul.f32 %v170, %v144
    %v172 = vmul.f32 %v171, %v170
    %v173 = vmul.f32 0.5, %v172
    %v174 = vsub.f32 1.5, %v173
    %v175 = vmul.f32 %v170, %v174
    %vm176 = vweird.f32 %v144
    %vm177 = vweird.f32 %v170
    %vm178 = vmor %vm176, %vm177
    %v179 = vsel %vm178, %v170, %v175
    %v180 = vrsqrt.pop %v145
    %v181 = vmul.f32 %v180, %v145
    %v182 = vmul.f32 %v181, %v180
    %v183 = vmul.f32 0.5, %v182
    %v184 = vsub.f32 1.5, %v183
    %v185 = vmul.f32 %v180, %v184
    %vm186 = vweird.f32 %v145
    %vm187 = vweird.f32 %v180
    %vm188 = vmor %vm186, %vm187
    %v189 = vsel %vm188, %v180, %v185
    %v190 = vrsqrt.pop %v146
    %v191 = vmul.f32 %v190, %v146
    %v192 = vmul.f32 %v191, %v190
    %v193 = vmul.f32 0.5, %v192
    %v194 = vsub.f32 1.5, %v193
    %v195 = vmul.f32 %v190, %v194
    %vm196 = vweird.f32 %v146
    %vm197 = vweird.f32 %v190
    %vm198 = vmor %vm196, %vm197
    %v199 = vsel %vm198, %v190, %v195
    %v200 = vrsqrt.pop %v147
    %v201 = vmul.f32 %v200, %v147
    %v202 = vmul.f32 %v201, %v200
    %v203 = vmul.f32 0.5, %v202
    %v204 = vsub.f32 1.5, %v203
    %v205 = vmul.f32 %v200, %v204
    %vm206 = vweird.f32 %v147
    %vm207 = vweird.f32 %v200
    %vm208 = vmor %vm206, %vm207
    %v209 = vsel %vm208, %v200, %v205
    %v210 = vrsqrt.pop %v148
    %v211 = vmul.f32 %v210, %v148
    %v212 = vmul.f32 %v211, %v210
    %v213 = vmul.f32 0.5, %v212
    %v214 = vsub.f32 1.5, %v213
    %v215 = vmul.f32 %v210, %v214
    %vm216 = vweird.f32 %v148
    %vm217 = vweird.f32 %v210
    %vm218 = vmor %vm216, %vm217
    %v219 = vsel %vm218, %v210, %v215
    %v220 = vrsqrt.pop %v149
    %v221 = vmul.f32 %v220, %v149
    %v222 = vmul.f32 %v221, %v220
    %v223 = vmul.f32 0.5, %v222
    %v224 = vsub.f32 1.5, %v223
    %v225 = vmul.f32 %v220, %v224
    %vm226 = vweird.f32 %v149
    %vm227 = vweird.f32 %v220
    %vm228 = vmor %vm226, %vm227
    %v229 = vsel %vm228, %v220, %v225
    %v230 = vmul.f32 %v94, %v159
    %v231 = vmul.f32 %v95, %v169
    %v232 = vmul.f32 %v96, %v179
    %v233 = vmul.f32 %v97, %v189
    %v234 = vmul.f32 %v98, %v199
    %v235 = vmul.f32 %v99, %v209
    %v236 = vmul.f32 %v100, %v219
    %v237 = vmul.f32 %v101, %v229
    %v239 = vperm.slane %v50, 0
    %v241 = vmul.f32 %v230, %v239
    %v242 = vmul.f32 %v231, %v239
    %v243 = vmul.f32 %v232, %v239
    %v244 = vmul.f32 %v233, %v239
    %v245 = vmul.f32 %v234, %v239
    %v246 = vmul.f32 %v235, %v239
    %v247 = vmul.f32 %v236, %v239
    %v248 = vmul.f32 %v237, %v239
    %v250 = vperm.slane %v51, 0
    %v252 = vadd.f32 %v241, %v250
    %v253 = vadd.f32 %v242, %v250
    %v254 = vadd.f32 %v243, %v250
    %v255 = vadd.f32 %v244, %v250
    %v256 = vadd.f32 %v245, %v250
    %v257 = vadd.f32 %v246, %v250
    %v258 = vadd.f32 %v247, %v250
    %v259 = vadd.f32 %v248, %v250
    %v260 = vld [vmem:[%s1] sm:$0xff]
    %v261 = vld [vmem:[%s1 + $0x8] sm:$0xff]
    %v262 = vld [vmem:[%s1 + $0x10] sm:$0xff]
    %v263 = vld [vmem:[%s1 + $0x18] sm:$0xff]
    %v264 = vld [vmem:[%s1 + $0x20] sm:$0xff]
    %v265 = vld [vmem:[%s1 + $0x28] sm:$0xff]
    %v266 = vld [vmem:[%s1 + $0x30] sm:$0xff]
    %v267 = vld [vmem:[%s1 + $0x38] sm:$0xff]
    %v268 = vld [vmem:[%s1 + $0x40] sm:$0xff]
    %v269 = vld [vmem:[%s1 + $0x48] sm:$0xff]
    %v270 = vld [vmem:[%s1 + $0x50] sm:$0xff]
    %v271 = vld [vmem:[%s1 + $0x58] sm:$0xff]
    %v273 = vsel %vm54, %v252, 0
    %v276 = vsel %vm54, %v253, 0
    %v279 = vsel %vm54, %v254, 0
    %v282 = vsel %vm54, %v255, 0
    %v285 = vsel %vm54, %v256, 0
    %v288 = vsel %vm54, %v257, 0
    %v291 = vsel %vm54, %v258, 0
    %v294 = vsel %vm54, %v259, 0
    %v297 = vsel %vm54, %v260, 0
    %v300 = vsel %vm54, %v261, 0
    %v303 = vsel %vm54, %v262, 0
    %v306 = vsel %vm54, %v263, 0
    %v309 = vsel %vm54, %v264, 0
    %v312 = vsel %vm54, %v265, 0
    %v315 = vsel %vm54, %v266, 0
    %v318 = vsel %vm54, %v267, 0
    %v321 = vsel %vm54, %v268, 0
    %v324 = vsel %vm54, %v269, 0
    %v327 = vsel %vm54, %v270, 0
    %v330 = vsel %vm54, %v271, 0
    %332 = vmatpush.xpose.msra.mxu0 0.0
    %333 = vmatpush.xpose.msra.mxu0 0.0
    %334 = vmatpush.xpose.msra.mxu0 0.0
    %335 = vmatpush.xpose.msra.mxu0 0.0
    %336 = vmatpush.xpose.msra.mxu0 %v330
    %337 = vmatpush.xpose.msra.mxu0 %v327
    %338 = vmatpush.xpose.msra.mxu0 %v324
    %339 = vmatpush.xpose.msra.mxu0 %v321
    %340 = vmatpush.xpose.msra.mxu0 %v318
    %341 = vmatpush.xpose.msra.mxu0 %v315
    %342 = vmatpush.xpose.msra.mxu0 %v312
    %343 = vmatpush.xpose.msra.mxu0 %v309
    %344 = vmatpush.xpose.msra.mxu0 %v306
    %345 = vmatpush.xpose.msra.mxu0 %v303
    %346 = vmatpush.xpose.msra.mxu0 %v300
    %347 = vmatpush.xpose.msra.mxu0 %v297
    %348 = vmatmul.f32.gmra.mxu0 %v273
    %v349 = vpop.f32.mrf.mxu0
    %v350 = vadd.f32 0.0, %v349
    %351 = vmatmul.f32.gmra.mxu0 %v276
    %v352 = vpop.f32.mrf.mxu0
    %v353 = vadd.f32 0.0, %v352
    %354 = vmatmul.f32.gmra.mxu0 %v279
    %v355 = vpop.f32.mrf.mxu0
    %v356 = vadd.f32 0.0, %v355
    %357 = vmatmul.f32.gmra.mxu0 %v282
    %v358 = vpop.f32.mrf.mxu0
    %v359 = vadd.f32 0.0, %v358
    %360 = vmatmul.f32.gmra.mxu0 %v285
    %v361 = vpop.f32.mrf.mxu0
    %v362 = vadd.f32 0.0, %v361
    %363 = vmatmul.f32.gmra.mxu0 %v288
    %v364 = vpop.f32.mrf.mxu0
    %v365 = vadd.f32 0.0, %v364
    %366 = vmatmul.f32.gmra.mxu0 %v291
    %v367 = vpop.f32.mrf.mxu0
    %v368 = vadd.f32 0.0, %v367
    %369 = vmatmul.f32.gmra.mxu0 %v294
    %v370 = vpop.f32.mrf.mxu0
    %v371 = vadd.f32 0.0, %v370
    %372 = vdwg.mxu0
    %v373 = vld [vmem:[%s3] sm:$0xff]
    %v374 = vld [vmem:[%s3 + $0x8] sm:$0xff]
    %v375 = vlaneseq
    %v376 = vshrl.u32 %v375, 7
    %v377 = vlaneseq
    %v378 = vand.u32 %v377, 127
    %vm379 = vcmp.lt.s32.totalorder %v378, 8
    %v380 = vsub.s32 %v378, 8
    %v381 = vadd.s32 %v378, 1
    %v382 = vmul.u32 %v381, 2
    %vm383 = vcmp.lt.s32.totalorder %v376, %v382
    %vm384 = vmand %vm379, %vm383
    %v385 = vsub.s32 %v378, 4
    %v386 = vmul.u32 %v385, 2
    %vm387 = vcmp.ge.s32.totalorder %v376, %v386
    %vm388 = vmand %vm384, %vm387
    %vm389 = vmxor %vm379, 1
    %vm390 = vcmp.ge.s32.totalorder %v380, %v376
    %vm391 = vmand %vm389, %vm390
    %v392 = vadd.s32 %v376, 8
    %vm393 = vcmp.lt.s32.totalorder %v380, %v392
    %vm394 = vmand %vm391, %vm393
    %vm395 = vmor %vm388, %vm394
    %v396 = vmul.u32 %v378, 2
    %vm397 = vcmp.ge.s32.totalorder %v376, %v396
    %vm398 = vmand %vm379, %vm397
    %vm399 = vmand %vm398, %vm383
    %v400 = vsub.s32 %v378, 1
    %v401 = vmul.u32 %v400, 2
    %vm402 = vcmp.ge.s32.totalorder %v376, %v401
    %vm403 = vmand %vm379, %vm402
    %vm404 = vcmp.lt.s32.totalorder %v376, %v396
    %vm405 = vmand %vm403, %vm404
    %v406 = vsub.s32 %v378, 2
    %v407 = vmul.u32 %v406, 2
    %vm408 = vcmp.ge.s32.totalorder %v376, %v407
    %vm409 = vmand %vm379, %vm408
    %v410 = vadd.s32 %v406, 1
    %v411 = vmul.u32 %v410, 2
    %vm412 = vcmp.lt.s32.totalorder %v376, %v411
    %vm413 = vmand %vm409, %vm412
    %v414 = vsub.s32 %v378, 3
    %v415 = vmul.u32 %v414, 2
    %vm416 = vcmp.ge.s32.totalorder %v376, %v415
    %vm417 = vmand %vm379, %vm416
    %v418 = vadd.s32 %v414, 1
    %v419 = vmul.u32 %v418, 2
    %vm420 = vcmp.lt.s32.totalorder %v376, %v419
    %vm421 = vmand %vm417, %vm420
    %vm422 = vmand %vm379, %vm387
    %v423 = vadd.s32 %v385, 1
    %v424 = vmul.u32 %v423, 2
    %vm425 = vcmp.lt.s32.totalorder %v376, %v424
    %vm426 = vmand %vm422, %vm425
    %vm427 = vcmp.eq.s32.totalorder %v380, %v376
    %vm428 = vmand %vm389, %vm427
    %v429 = vadd.s32 %v376, 1
    %vm430 = vcmp.eq.s32.totalorder %v380, %v429
    %vm431 = vmand %vm389, %vm430
    %v432 = vadd.s32 %v376, 2
    %vm433 = vcmp.eq.s32.totalorder %v380, %v432
    %vm434 = vmand %vm389, %vm433
    %v435 = vadd.s32 %v376, 3
    %vm436 = vcmp.eq.s32.totalorder %v380, %v435
    %vm437 = vmand %vm389, %vm436
    %v438 = vadd.s32 %v376, 4
    %vm439 = vcmp.eq.s32.totalorder %v380, %v438
    %vm440 = vmand %vm389, %vm439
    %v441 = vadd.s32 %v376, 5
    %vm442 = vcmp.eq.s32.totalorder %v380, %v441
    %vm443 = vmand %vm389, %vm442
    %v444 = vadd.s32 %v376, 6
    %vm445 = vcmp.eq.s32.totalorder %v380, %v444
    %vm446 = vmand %vm389, %vm445
    %v447 = vadd.s32 %v376, 7
    %vm448 = vcmp.eq.s32.totalorder %v380, %v447
    %vm449 = vmand %vm389, %vm448
    %vm450 = vcmask 130048
    %v452 = vsel %vm450, %v350, 0
    %454 = vmatpush.msra.mxu0 0.0
    %455 = vmatpush.msra.mxu0 0.0
    %456 = vmatpush.msra.mxu0 0.0
    %457 = vmatpush.msra.mxu0 0.0
    %458 = vmatpush.msra.mxu0 0.0
    %459 = vmatpush.msra.mxu0 0.0
    %460 = vmatpush.msra.mxu0 0.0
    %461 = vmatpush.msra.mxu0 0.0
    %462 = vmatpush.msra.mxu0 0.0
    %463 = vmatpush.msra.mxu0 0.0
    %464 = vmatpush.msra.mxu0 0.0
    %465 = vmatpush.msra.mxu0 0.0
    %466 = vmatpush.msra.mxu0 0.0
    %467 = vmatpush.msra.mxu0 0.0
    %468 = vmatpush.msra.mxu0 %v374
    %469 = vmatpush.msra.mxu0 %v373
    %470 = vmatmul.f32.gmra.mxu0 %v452
    %v471 = vpop.f32.mrf.mxu0
    %v472 = vadd.f32 0.0, %v471
    %473 = vdwg.mxu0
    %475 = vset.pattern.permute.xlu0 0
    %476 = vperm.xlu0 %475, %v472
    %v477 = vpop.permute.xlu0 %476
    %v479 = vsel %vm399, %v477, 0.0
    %v480 = vadd.f32 %v479, 0.0
    %481 = vset.pattern.permute.xlu0 1
    %482 = vperm.xlu0 %481, %v472
    %v483 = vpop.permute.xlu0 %482
    %v485 = vsel %vm405, %v483, 0.0
    %v486 = vadd.f32 %v480, %v485
    %487 = vset.pattern.permute.xlu0 2
    %488 = vperm.xlu0 %487, %v472
    %v489 = vpop.permute.xlu0 %488
    %v491 = vsel %vm413, %v489, 0.0
    %v492 = vadd.f32 %v486, %v491
    %493 = vset.pattern.permute.xlu0 3
    %494 = vperm.xlu0 %493, %v472
    %v495 = vpop.permute.xlu0 %494
    %v497 = vsel %vm421, %v495, 0.0
    %v498 = vadd.f32 %v492, %v497
    %499 = vset.pattern.permute.xlu0 4
    %500 = vperm.xlu0 %499, %v472
    %v501 = vpop.permute.xlu0 %500
    %v503 = vsel %vm426, %v501, 0.0
    %v504 = vadd.f32 %v498, %v503
    %505 = vset.pattern.permute.xlu0 5
    %506 = vperm.xlu0 %505, %v472
    %v507 = vpop.permute.xlu0 %506
    %v509 = vsel %vm428, %v507, 0.0
    %v510 = vadd.f32 %v504, %v509
    %511 = vset.pattern.permute.xlu0 6
    %512 = vperm.xlu0 %511, %v472
    %v513 = vpop.permute.xlu0 %512
    %v515 = vsel %vm431, %v513, 0.0
    %v516 = vadd.f32 %v510, %v515
    %517 = vset.pattern.permute.xlu0 7
    %518 = vperm.xlu0 %517, %v472
    %v519 = vpop.permute.xlu0 %518
    %v521 = vsel %vm434, %v519, 0.0
    %v522 = vadd.f32 %v516, %v521
    %523 = vset.pattern.permute.xlu0 8
    %524 = vperm.xlu0 %523, %v472
    %v525 = vpop.permute.xlu0 %524
    %v527 = vsel %vm437, %v525, 0.0
    %v528 = vadd.f32 %v522, %v527
    %529 = vset.pattern.permute.xlu0 9
    %530 = vperm.xlu0 %529, %v472
    %v531 = vpop.permute.xlu0 %530
    %v533 = vsel %vm440, %v531, 0.0
    %v534 = vadd.f32 %v528, %v533
    %535 = vset.pattern.permute.xlu0 10
    %536 = vperm.xlu0 %535, %v472
    %v537 = vpop.permute.xlu0 %536
    %v539 = vsel %vm443, %v537, 0.0
    %v540 = vadd.f32 %v534, %v539
    %541 = vset.pattern.permute.xlu0 11
    %542 = vperm.xlu0 %541, %v472
    %v543 = vpop.permute.xlu0 %542
    %v545 = vsel %vm446, %v543, 0.0
    %v546 = vadd.f32 %v540, %v545
    %547 = vset.pattern.permute.xlu0 12
    %548 = vperm.xlu0 %547, %v472
    %v549 = vpop.permute.xlu0 %548
    %v551 = vsel %vm449, %v549, 0.0
    %v552 = vadd.f32 %v546, %v551
    %556 = vrot.lane.b32.xlu0 %v368, 96
    %v557 = vpop.permute.xlu0 %556
    %558 = vrot.lane.b32.xlu0 %v356, 96
    %v559 = vpop.permute.xlu0 %558
    %560 = vrot.lane.b32.xlu0 %v359, 96
    %v561 = vpop.permute.xlu0 %560
    %v562 = vsel %vm450, %v557, 0
    %v564 = vsel %vm450, %v559, 0
    %v566 = vsel %vm450, %v561, 0
    %568 = vmatpush.xpose.msra.mxu0 0.0
    %569 = vmatpush.xpose.msra.mxu0 0.0
    %570 = vmatpush.xpose.msra.mxu0 0.0
    %571 = vmatpush.xpose.msra.mxu0 0.0
    %572 = vmatpush.xpose.msra.mxu0 0.0
    %573 = vmatpush.xpose.msra.mxu0 0.0
    %574 = vmatpush.xpose.msra.mxu0 0.0
    %575 = vmatpush.xpose.msra.mxu0 0.0
    %576 = vmatpush.xpose.msra.mxu0 0.0
    %577 = vmatpush.xpose.msra.mxu0 0.0
    %578 = vmatpush.xpose.msra.mxu0 0.0
    %579 = vmatpush.xpose.msra.mxu0 0.0
    %580 = vmatpush.xpose.msra.mxu0 0.0
    %581 = vmatpush.xpose.msra.mxu0 %v566
    %582 = vmatpush.xpose.msra.mxu0 %v564
    %583 = vmatpush.xpose.msra.mxu0 %v562
    %584 = vmatmul.f32.gmra.mxu0 %v452
    %v585 = vpop.f32.mrf.mxu0
    %v586 = vadd.f32 %v552, %v585
    %587 = vdwg.mxu0
    %v588 = vmul.f32 %v586, 0.25
    %v589 = vsel %vm395, %v588, -1e+30
    %vm590 = vcmask 195584
    %v591 = vsel %vm590, %v589, -inf
    %592 = vmax.xlane.f32.xlu0 %v591
    %v593 = vpop.xlane.xlu0 %592
    %v594 = vsub.f32 %v589, %v593
    %v595 = vmul.f32 %v594, 1.442695
    %v596 = vpow.pop %v595
    %v597 = vsel %vm590, %v596, 0.0
    %598 = vadd.xlane.f32.xlu0 %v597
    %v599 = vpop.xlane.xlu0 %598
    %v600 = vrcp.pop %v599
    %v601 = vmul.f32 %v599, %v600
    %v602 = vsub.f32 1.0, %v601
    %v603 = vmul.f32 %v600, %v602
    %v604 = vadd.f32 %v600, %v603
    %vm605 = vweird.f32 %v599
    %vm606 = vweird.f32 %v600
    %vm607 = vmor %vm605, %vm606
    %v608 = vsel %vm607, %v600, %v604
    %v609 = vand.u32 2147483647, %v599
    %vm610 = vcmp.eq.f32.partialorder %v609, 8.507059e+37
    %v611 = vand.u32 %v599, 2147483648
    %v612 = vor.u32 1.1754944e-38, %v611
    %v613 = vsel %vm610, %v612, %v608
    %v614 = vmul.f32 %v596, %v613
    %615 = vrot.lane.b32.xlu0 %v368, 64
    %v616 = vpop.permute.xlu0 %615
    %617 = vrot.lane.b32.xlu0 %v356, 64
    %v618 = vpop.permute.xlu0 %617
    %619 = vrot.lane.b32.xlu0 %v359, 64
    %v620 = vpop.permute.xlu0 %619
    %v625 = vsel %vm590, %v614, 0
    %627 = vmatpush.msra.mxu0 0.0
    %628 = vmatpush.msra.mxu0 0.0
    %629 = vmatpush.msra.mxu0 0.0
    %630 = vmatpush.msra.mxu0 0.0
    %631 = vmatpush.msra.mxu0 0.0
    %632 = vmatpush.msra.mxu0 0.0
    %633 = vmatpush.msra.mxu0 0.0
    %634 = vmatpush.msra.mxu0 0.0
    %635 = vmatpush.msra.mxu0 0.0
    %636 = vmatpush.msra.mxu0 0.0
    %637 = vmatpush.msra.mxu0 0.0
    %638 = vmatpush.msra.mxu0 0.0
    %639 = vmatpush.msra.mxu0 0.0
    %640 = vmatpush.msra.mxu0 %v620
    %641 = vmatpush.msra.mxu0 %v618
    %642 = vmatpush.msra.mxu0 %v616
    %643 = vmatmul.f32.gmra.mxu0 %v625
    %v644 = vpop.f32.mrf.mxu0
    %v645 = vadd.f32 0.0, %v644
    %646 = vdwg.mxu0
    %647 = vrot.lane.b32.xlu0 %v350, 112
    %v648 = vpop.permute.xlu0 %647
    %v649 = vsel %vm450, %v648, 0
    %651 = vmatpush.msra.mxu0 0.0
    %652 = vmatpush.msra.mxu0 0.0
    %653 = vmatpush.msra.mxu0 0.0
    %654 = vmatpush.msra.mxu0 0.0
    %655 = vmatpush.msra.mxu0 0.0
    %656 = vmatpush.msra.mxu0 0.0
    %657 = vmatpush.msra.mxu0 0.0
    %658 = vmatpush.msra.mxu0 0.0
    %659 = vmatpush.msra.mxu0 0.0
    %660 = vmatpush.msra.mxu0 0.0
    %661 = vmatpush.msra.mxu0 0.0
    %662 = vmatpush.msra.mxu0 0.0
    %663 = vmatpush.msra.mxu0 0.0
    %664 = vmatpush.msra.mxu0 0.0
    %665 = vmatpush.msra.mxu0 %v374
    %666 = vmatpush.msra.mxu0 %v373
    %667 = vmatmul.f32.gmra.mxu0 %v649
    %v668 = vpop.f32.mrf.mxu0
    %v669 = vadd.f32 0.0, %v668
    %670 = vdwg.mxu0
    %672 = vset.pattern.permute.xlu0 0
    %673 = vperm.xlu0 %672, %v669
    %v674 = vpop.permute.xlu0 %673
    %v676 = vsel %vm399, %v674, 0.0
    %v677 = vadd.f32 %v676, 0.0
    %678 = vset.pattern.permute.xlu0 1
    %679 = vperm.xlu0 %678, %v669
    %v680 = vpop.permute.xlu0 %679
    %v682 = vsel %vm405, %v680, 0.0
    %v683 = vadd.f32 %v677, %v682
    %684 = vset.pattern.permute.xlu0 2
    %685 = vperm.xlu0 %684, %v669
    %v686 = vpop.permute.xlu0 %685
    %v688 = vsel %vm413, %v686, 0.0
    %v689 = vadd.f32 %v683, %v688
    %690 = vset.pattern.permute.xlu0 3
    %691 = vperm.xlu0 %690, %v669
    %v692 = vpop.permute.xlu0 %691
    %v694 = vsel %vm421, %v692, 0.0
    %v695 = vadd.f32 %v689, %v694
    %696 = vset.pattern.permute.xlu0 4
    %697 = vperm.xlu0 %696, %v669
    %v698 = vpop.permute.xlu0 %697
    %v700 = vsel %vm426, %v698, 0.0
    %v701 = vadd.f32 %v695, %v700
    %702 = vset.pattern.permute.xlu0 5
    %703 = vperm.xlu0 %702, %v669
    %v704 = vpop.permute.xlu0 %703
    %v706 = vsel %vm428, %v704, 0.0
    %v707 = vadd.f32 %v701, %v706
    %708 = vset.pattern.permute.xlu0 6
    %709 = vperm.xlu0 %708, %v669
    %v710 = vpop.permute.xlu0 %709
    %v712 = vsel %vm431, %v710, 0.0
    %v713 = vadd.f32 %v707, %v712
    %714 = vset.pattern.permute.xlu0 7
    %715 = vperm.xlu0 %714, %v669
    %v716 = vpop.permute.xlu0 %715
    %v718 = vsel %vm434, %v716, 0.0
    %v719 = vadd.f32 %v713, %v718
    %720 = vset.pattern.permute.xlu0 8
    %721 = vperm.xlu0 %720, %v669
    %v722 = vpop.permute.xlu0 %721
    %v724 = vsel %vm437, %v722, 0.0
    %v725 = vadd.f32 %v719, %v724
    %726 = vset.pattern.permute.xlu0 9
    %727 = vperm.xlu0 %726, %v669
    %v728 = vpop.permute.xlu0 %727
    %v730 = vsel %vm440, %v728, 0.0
    %v731 = vadd.f32 %v725, %v730
    %732 = vset.pattern.permute.xlu0 10
    %733 = vperm.xlu0 %732, %v669
    %v734 = vpop.permute.xlu0 %733
    %v736 = vsel %vm443, %v734, 0.0
    %v737 = vadd.f32 %v731, %v736
    %738 = vset.pattern.permute.xlu0 11
    %739 = vperm.xlu0 %738, %v669
    %v740 = vpop.permute.xlu0 %739
    %v742 = vsel %vm446, %v740, 0.0
    %v743 = vadd.f32 %v737, %v742
    %744 = vset.pattern.permute.xlu0 12
    %745 = vperm.xlu0 %744, %v669
    %v746 = vpop.permute.xlu0 %745
    %v748 = vsel %vm449, %v746, 0.0
    %v749 = vadd.f32 %v743, %v748
    %750 = vrot.lane.b32.xlu0 %v368, 80
    %v751 = vpop.permute.xlu0 %750
    %752 = vrot.lane.b32.xlu0 %v356, 80
    %v753 = vpop.permute.xlu0 %752
    %754 = vrot.lane.b32.xlu0 %v359, 80
    %v755 = vpop.permute.xlu0 %754
    %v756 = vsel %vm450, %v751, 0
    %v758 = vsel %vm450, %v753, 0
    %v760 = vsel %vm450, %v755, 0
    %762 = vmatpush.xpose.msra.mxu0 0.0
    %763 = vmatpush.xpose.msra.mxu0 0.0
    %764 = vmatpush.xpose.msra.mxu0 0.0
    %765 = vmatpush.xpose.msra.mxu0 0.0
    %766 = vmatpush.xpose.msra.mxu0 0.0
    %767 = vmatpush.xpose.msra.mxu0 0.0
    %768 = vmatpush.xpose.msra.mxu0 0.0
    %769 = vmatpush.xpose.msra.mxu0 0.0
    %770 = vmatpush.xpose.msra.mxu0 0.0
    %771 = vmatpush.xpose.msra.mxu0 0.0
    %772 = vmatpush.xpose.msra.mxu0 0.0
    %773 = vmatpush.xpose.msra.mxu0 0.0
    %774 = vmatpush.xpose.msra.mxu0 0.0
    %775 = vmatpush.xpose.msra.mxu0 %v760
    %776 = vmatpush.xpose.msra.mxu0 %v758
    %777 = vmatpush.xpose.msra.mxu0 %v756
    %778 = vmatmul.f32.gmra.mxu0 %v649
    %v779 = vpop.f32.mrf.mxu0
    %v780 = vadd.f32 %v749, %v779
    %781 = vdwg.mxu0
    %v782 = vmul.f32 %v780, 0.25
    %v783 = vsel %vm395, %v782, -1e+30
    %v784 = vsel %vm590, %v783, -inf
    %785 = vmax.xlane.f32.xlu0 %v784
    %v786 = vpop.xlane.xlu0 %785
    %v787 = vsub.f32 %v783, %v786
    %v788 = vmul.f32 %v787, 1.442695
    %v789 = vpow.pop %v788
    %v790 = vsel %vm590, %v789, 0.0
    %791 = vadd.xlane.f32.xlu0 %v790
    %v792 = vpop.xlane.xlu0 %791
    %v793 = vrcp.pop %v792
    %v794 = vmul.f32 %v792, %v793
    %v795 = vsub.f32 1.0, %v794
    %v796 = vmul.f32 %v793, %v795
    %v797 = vadd.f32 %v793, %v796
    %vm798 = vweird.f32 %v792
    %vm799 = vweird.f32 %v793
    %vm800 = vmor %vm798, %vm799
    %v801 = vsel %vm800, %v793, %v797
    %v802 = vand.u32 2147483647, %v792
    %vm803 = vcmp.eq.f32.partialorder %v802, 8.507059e+37
    %v804 = vand.u32 %v792, 2147483648
    %v805 = vor.u32 1.1754944e-38, %v804
    %v806 = vsel %vm803, %v805, %v801
    %v807 = vmul.f32 %v789, %v806
    %808 = vrot.lane.b32.xlu0 %v368, 48
    %v809 = vpop.permute.xlu0 %808
    %810 = vrot.lane.b32.xlu0 %v356, 48
    %v811 = vpop.permute.xlu0 %810
    %812 = vrot.lane.b32.xlu0 %v359, 48
    %v813 = vpop.permute.xlu0 %812
    %v818 = vsel %vm590, %v807, 0
    %820 = vmatpush.msra.mxu0 0.0
    %821 = vmatpush.msra.mxu0 0.0
    %822 = vmatpush.msra.mxu0 0.0
    %823 = vmatpush.msra.mxu0 0.0
    %824 = vmatpush.msra.mxu0 0.0
    %825 = vmatpush.msra.mxu0 0.0
    %826 = vmatpush.msra.mxu0 0.0
    %827 = vmatpush.msra.mxu0 0.0
    %828 = vmatpush.msra.mxu0 0.0
    %829 = vmatpush.msra.mxu0 0.0
    %830 = vmatpush.msra.mxu0 0.0
    %831 = vmatpush.msra.mxu0 0.0
    %832 = vmatpush.msra.mxu0 0.0
    %833 = vmatpush.msra.mxu0 %v813
    %834 = vmatpush.msra.mxu0 %v811
    %835 = vmatpush.msra.mxu0 %v809
    %836 = vmatmul.f32.gmra.mxu0 %v818
    %v837 = vpop.f32.mrf.mxu0
    %v838 = vadd.f32 0.0, %v837
    %839 = vdwg.mxu0
    %841 = vrot.lane.b32.xlu0 %v838, 16
    %v842 = vpop.permute.xlu0 %841
    %v844 = vsel %vm450, %v645, %v842
    %v846 = vsel %vm450, %v353, 0
    %848 = vmatpush.msra.mxu0 0.0
    %849 = vmatpush.msra.mxu0 0.0
    %850 = vmatpush.msra.mxu0 0.0
    %851 = vmatpush.msra.mxu0 0.0
    %852 = vmatpush.msra.mxu0 0.0
    %853 = vmatpush.msra.mxu0 0.0
    %854 = vmatpush.msra.mxu0 0.0
    %855 = vmatpush.msra.mxu0 0.0
    %856 = vmatpush.msra.mxu0 0.0
    %857 = vmatpush.msra.mxu0 0.0
    %858 = vmatpush.msra.mxu0 0.0
    %859 = vmatpush.msra.mxu0 0.0
    %860 = vmatpush.msra.mxu0 0.0
    %861 = vmatpush.msra.mxu0 0.0
    %862 = vmatpush.msra.mxu0 %v374
    %863 = vmatpush.msra.mxu0 %v373
    %864 = vmatmul.f32.gmra.mxu0 %v846
    %v865 = vpop.f32.mrf.mxu0
    %v866 = vadd.f32 0.0, %v865
    %867 = vdwg.mxu0
    %869 = vset.pattern.permute.xlu0 0
    %870 = vperm.xlu0 %869, %v866
    %v871 = vpop.permute.xlu0 %870
    %v873 = vsel %vm399, %v871, 0.0
    %v874 = vadd.f32 %v873, 0.0
    %875 = vset.pattern.permute.xlu0 1
    %876 = vperm.xlu0 %875, %v866
    %v877 = vpop.permute.xlu0 %876
    %v879 = vsel %vm405, %v877, 0.0
    %v880 = vadd.f32 %v874, %v879
    %881 = vset.pattern.permute.xlu0 2
    %882 = vperm.xlu0 %881, %v866
    %v883 = vpop.permute.xlu0 %882
    %v885 = vsel %vm413, %v883, 0.0
    %v886 = vadd.f32 %v880, %v885
    %887 = vset.pattern.permute.xlu0 3
    %888 = vperm.xlu0 %887, %v866
    %v889 = vpop.permute.xlu0 %888
    %v891 = vsel %vm421, %v889, 0.0
    %v892 = vadd.f32 %v886, %v891
    %893 = vset.pattern.permute.xlu0 4
    %894 = vperm.xlu0 %893, %v866
    %v895 = vpop.permute.xlu0 %894
    %v897 = vsel %vm426, %v895, 0.0
    %v898 = vadd.f32 %v892, %v897
    %899 = vset.pattern.permute.xlu0 5
    %900 = vperm.xlu0 %899, %v866
    %v901 = vpop.permute.xlu0 %900
    %v903 = vsel %vm428, %v901, 0.0
    %v904 = vadd.f32 %v898, %v903
    %905 = vset.pattern.permute.xlu0 6
    %906 = vperm.xlu0 %905, %v866
    %v907 = vpop.permute.xlu0 %906
    %v909 = vsel %vm431, %v907, 0.0
    %v910 = vadd.f32 %v904, %v909
    %911 = vset.pattern.permute.xlu0 7
    %912 = vperm.xlu0 %911, %v866
    %v913 = vpop.permute.xlu0 %912
    %v915 = vsel %vm434, %v913, 0.0
    %v916 = vadd.f32 %v910, %v915
    %917 = vset.pattern.permute.xlu0 8
    %918 = vperm.xlu0 %917, %v866
    %v919 = vpop.permute.xlu0 %918
    %v921 = vsel %vm437, %v919, 0.0
    %v922 = vadd.f32 %v916, %v921
    %923 = vset.pattern.permute.xlu0 9
    %924 = vperm.xlu0 %923, %v866
    %v925 = vpop.permute.xlu0 %924
    %v927 = vsel %vm440, %v925, 0.0
    %v928 = vadd.f32 %v922, %v927
    %929 = vset.pattern.permute.xlu0 10
    %930 = vperm.xlu0 %929, %v866
    %v931 = vpop.permute.xlu0 %930
    %v933 = vsel %vm443, %v931, 0.0
    %v934 = vadd.f32 %v928, %v933
    %935 = vset.pattern.permute.xlu0 11
    %936 = vperm.xlu0 %935, %v866
    %v937 = vpop.permute.xlu0 %936
    %v939 = vsel %vm446, %v937, 0.0
    %v940 = vadd.f32 %v934, %v939
    %941 = vset.pattern.permute.xlu0 12
    %942 = vperm.xlu0 %941, %v866
    %v943 = vpop.permute.xlu0 %942
    %v945 = vsel %vm449, %v943, 0.0
    %v946 = vadd.f32 %v940, %v945
    %950 = vrot.lane.b32.xlu0 %v371, 96
    %v951 = vpop.permute.xlu0 %950
    %952 = vrot.lane.b32.xlu0 %v362, 96
    %v953 = vpop.permute.xlu0 %952
    %954 = vrot.lane.b32.xlu0 %v365, 96
    %v955 = vpop.permute.xlu0 %954
    %v956 = vsel %vm450, %v951, 0
    %v958 = vsel %vm450, %v953, 0
    %v960 = vsel %vm450, %v955, 0
    %962 = vmatpush.xpose.msra.mxu0 0.0
    %963 = vmatpush.xpose.msra.mxu0 0.0
    %964 = vmatpush.xpose.msra.mxu0 0.0
    %965 = vmatpush.xpose.msra.mxu0 0.0
    %966 = vmatpush.xpose.msra.mxu0 0.0
    %967 = vmatpush.xpose.msra.mxu0 0.0
    %968 = vmatpush.xpose.msra.mxu0 0.0
    %969 = vmatpush.xpose.msra.mxu0 0.0
    %970 = vmatpush.xpose.msra.mxu0 0.0
    %971 = vmatpush.xpose.msra.mxu0 0.0
    %972 = vmatpush.xpose.msra.mxu0 0.0
    %973 = vmatpush.xpose.msra.mxu0 0.0
    %974 = vmatpush.xpose.msra.mxu0 0.0
    %975 = vmatpush.xpose.msra.mxu0 %v960
    %976 = vmatpush.xpose.msra.mxu0 %v958
    %977 = vmatpush.xpose.msra.mxu0 %v956
    %978 = vmatmul.f32.gmra.mxu0 %v846
    %v979 = vpop.f32.mrf.mxu0
    %v980 = vadd.f32 %v946, %v979
    %981 = vdwg.mxu0
    %v982 = vmul.f32 %v980, 0.25
    %v983 = vsel %vm395, %v982, -1e+30
    %v984 = vsel %vm590, %v983, -inf
    %985 = vmax.xlane.f32.xlu0 %v984
    %v986 = vpop.xlane.xlu0 %985
    %v987 = vsub.f32 %v983, %v986
    %v988 = vmul.f32 %v987, 1.442695
    %v989 = vpow.pop %v988
    %v990 = vsel %vm590, %v989, 0.0
    %991 = vadd.xlane.f32.xlu0 %v990
    %v992 = vpop.xlane.xlu0 %991
    %v993 = vrcp.pop %v992
    %v994 = vmul.f32 %v992, %v993
    %v995 = vsub.f32 1.0, %v994
    %v996 = vmul.f32 %v993, %v995
    %v997 = vadd.f32 %v993, %v996
    %vm998 = vweird.f32 %v992
    %vm999 = vweird.f32 %v993
    %vm1000 = vmor %vm998, %vm999
    %v1001 = vsel %vm1000, %v993, %v997
    %v1002 = vand.u32 2147483647, %v992
    %vm1003 = vcmp.eq.f32.partialorder %v1002, 8.507059e+37
    %v1004 = vand.u32 %v992, 2147483648
    %v1005 = vor.u32 1.1754944e-38, %v1004
    %v1006 = vsel %vm1003, %v1005, %v1001
    %v1007 = vmul.f32 %v989, %v1006
    %1008 = vrot.lane.b32.xlu0 %v371, 64
    %v1009 = vpop.permute.xlu0 %1008
    %1010 = vrot.lane.b32.xlu0 %v362, 64
    %v1011 = vpop.permute.xlu0 %1010
    %1012 = vrot.lane.b32.xlu0 %v365, 64
    %v1013 = vpop.permute.xlu0 %1012
    %v1018 = vsel %vm590, %v1007, 0
    %1020 = vmatpush.msra.mxu0 0.0
    %1021 = vmatpush.msra.mxu0 0.0
    %1022 = vmatpush.msra.mxu0 0.0
    %1023 = vmatpush.msra.mxu0 0.0
    %1024 = vmatpush.msra.mxu0 0.0
    %1025 = vmatpush.msra.mxu0 0.0
    %1026 = vmatpush.msra.mxu0 0.0
    %1027 = vmatpush.msra.mxu0 0.0
    %1028 = vmatpush.msra.mxu0 0.0
    %1029 = vmatpush.msra.mxu0 0.0
    %1030 = vmatpush.msra.mxu0 0.0
    %1031 = vmatpush.msra.mxu0 0.0
    %1032 = vmatpush.msra.mxu0 0.0
    %1033 = vmatpush.msra.mxu0 %v1013
    %1034 = vmatpush.msra.mxu0 %v1011
    %1035 = vmatpush.msra.mxu0 %v1009
    %1036 = vmatmul.f32.gmra.mxu0 %v1018
    %v1037 = vpop.f32.mrf.mxu0
    %v1038 = vadd.f32 0.0, %v1037
    %1039 = vdwg.mxu0
    %1040 = vrot.lane.b32.xlu0 %v353, 112
    %v1041 = vpop.permute.xlu0 %1040
    %v1042 = vsel %vm450, %v1041, 0
    %1044 = vmatpush.msra.mxu0 0.0
    %1045 = vmatpush.msra.mxu0 0.0
    %1046 = vmatpush.msra.mxu0 0.0
    %1047 = vmatpush.msra.mxu0 0.0
    %1048 = vmatpush.msra.mxu0 0.0
    %1049 = vmatpush.msra.mxu0 0.0
    %1050 = vmatpush.msra.mxu0 0.0
    %1051 = vmatpush.msra.mxu0 0.0
    %1052 = vmatpush.msra.mxu0 0.0
    %1053 = vmatpush.msra.mxu0 0.0
    %1054 = vmatpush.msra.mxu0 0.0
    %1055 = vmatpush.msra.mxu0 0.0
    %1056 = vmatpush.msra.mxu0 0.0
    %1057 = vmatpush.msra.mxu0 0.0
    %1058 = vmatpush.msra.mxu0 %v374
    %1059 = vmatpush.msra.mxu0 %v373
    %1060 = vmatmul.f32.gmra.mxu0 %v1042
    %v1061 = vpop.f32.mrf.mxu0
    %v1062 = vadd.f32 0.0, %v1061
    %1063 = vdwg.mxu0
    %1065 = vset.pattern.permute.xlu0 0
    %1066 = vperm.xlu0 %1065, %v1062
    %v1067 = vpop.permute.xlu0 %1066
    %v1069 = vsel %vm399, %v1067, 0.0
    %v1070 = vadd.f32 %v1069, 0.0
    %1071 = vset.pattern.permute.xlu0 1
    %1072 = vperm.xlu0 %1071, %v1062
    %v1073 = vpop.permute.xlu0 %1072
    %v1075 = vsel %vm405, %v1073, 0.0
    %v1076 = vadd.f32 %v1070, %v1075
    %1077 = vset.pattern.permute.xlu0 2
    %1078 = vperm.xlu0 %1077, %v1062
    %v1079 = vpop.permute.xlu0 %1078
    %v1081 = vsel %vm413, %v1079, 0.0
    %v1082 = vadd.f32 %v1076, %v1081
    %1083 = vset.pattern.permute.xlu0 3
    %1084 = vperm.xlu0 %1083, %v1062
    %v1085 = vpop.permute.xlu0 %1084
    %v1087 = vsel %vm421, %v1085, 0.0
    %v1088 = vadd.f32 %v1082, %v1087
    %1089 = vset.pattern.permute.xlu0 4
    %1090 = vperm.xlu0 %1089, %v1062
    %v1091 = vpop.permute.xlu0 %1090
    %v1093 = vsel %vm426, %v1091, 0.0
    %v1094 = vadd.f32 %v1088, %v1093
    %1095 = vset.pattern.permute.xlu0 5
    %1096 = vperm.xlu0 %1095, %v1062
    %v1097 = vpop.permute.xlu0 %1096
    %v1099 = vsel %vm428, %v1097, 0.0
    %v1100 = vadd.f32 %v1094, %v1099
    %1101 = vset.pattern.permute.xlu0 6
    %1102 = vperm.xlu0 %1101, %v1062
    %v1103 = vpop.permute.xlu0 %1102
    %v1105 = vsel %vm431, %v1103, 0.0
    %v1106 = vadd.f32 %v1100, %v1105
    %1107 = vset.pattern.permute.xlu0 7
    %1108 = vperm.xlu0 %1107, %v1062
    %v1109 = vpop.permute.xlu0 %1108
    %v1111 = vsel %vm434, %v1109, 0.0
    %v1112 = vadd.f32 %v1106, %v1111
    %1113 = vset.pattern.permute.xlu0 8
    %1114 = vperm.xlu0 %1113, %v1062
    %v1115 = vpop.permute.xlu0 %1114
    %v1117 = vsel %vm437, %v1115, 0.0
    %v1118 = vadd.f32 %v1112, %v1117
    %1119 = vset.pattern.permute.xlu0 9
    %1120 = vperm.xlu0 %1119, %v1062
    %v1121 = vpop.permute.xlu0 %1120
    %v1123 = vsel %vm440, %v1121, 0.0
    %v1124 = vadd.f32 %v1118, %v1123
    %1125 = vset.pattern.permute.xlu0 10
    %1126 = vperm.xlu0 %1125, %v1062
    %v1127 = vpop.permute.xlu0 %1126
    %v1129 = vsel %vm443, %v1127, 0.0
    %v1130 = vadd.f32 %v1124, %v1129
    %1131 = vset.pattern.permute.xlu0 11
    %1132 = vperm.xlu0 %1131, %v1062
    %v1133 = vpop.permute.xlu0 %1132
    %v1135 = vsel %vm446, %v1133, 0.0
    %v1136 = vadd.f32 %v1130, %v1135
    %1137 = vset.pattern.permute.xlu0 12
    %1138 = vperm.xlu0 %1137, %v1062
    %v1139 = vpop.permute.xlu0 %1138
    %v1141 = vsel %vm449, %v1139, 0.0
    %v1142 = vadd.f32 %v1136, %v1141
    %1143 = vrot.lane.b32.xlu0 %v371, 80
    %v1144 = vpop.permute.xlu0 %1143
    %1145 = vrot.lane.b32.xlu0 %v362, 80
    %v1146 = vpop.permute.xlu0 %1145
    %1147 = vrot.lane.b32.xlu0 %v365, 80
    %v1148 = vpop.permute.xlu0 %1147
    %v1149 = vsel %vm450, %v1144, 0
    %v1151 = vsel %vm450, %v1146, 0
    %v1153 = vsel %vm450, %v1148, 0
    %1155 = vmatpush.xpose.msra.mxu0 0.0
    %1156 = vmatpush.xpose.msra.mxu0 0.0
    %1157 = vmatpush.xpose.msra.mxu0 0.0
    %1158 = vmatpush.xpose.msra.mxu0 0.0
    %1159 = vmatpush.xpose.msra.mxu0 0.0
    %1160 = vmatpush.xpose.msra.mxu0 0.0
    %1161 = vmatpush.xpose.msra.mxu0 0.0
    %1162 = vmatpush.xpose.msra.mxu0 0.0
    %1163 = vmatpush.xpose.msra.mxu0 0.0
    %1164 = vmatpush.xpose.msra.mxu0 0.0
    %1165 = vmatpush.xpose.msra.mxu0 0.0
    %1166 = vmatpush.xpose.msra.mxu0 0.0
    %1167 = vmatpush.xpose.msra.mxu0 0.0
    %1168 = vmatpush.xpose.msra.mxu0 %v1153
    %1169 = vmatpush.xpose.msra.mxu0 %v1151
    %1170 = vmatpush.xpose.msra.mxu0 %v1149
    %1171 = vmatmul.f32.gmra.mxu0 %v1042
    %v1172 = vpop.f32.mrf.mxu0
    %v1173 = vadd.f32 %v1142, %v1172
    %1174 = vdwg.mxu0
    %v1175 = vmul.f32 %v1173, 0.25
    %v1176 = vsel %vm395, %v1175, -1e+30
    %v1177 = vsel %vm590, %v1176, -inf
    %1178 = vmax.xlane.f32.xlu0 %v1177
    %v1179 = vpop.xlane.xlu0 %1178
    %v1180 = vsub.f32 %v1176, %v1179
    %v1181 = vmul.f32 %v1180, 1.442695
    %v1182 = vpow.pop %v1181
    %v1183 = vsel %vm590, %v1182, 0.0
    %1184 = vadd.xlane.f32.xlu0 %v1183
    %v1185 = vpop.xlane.xlu0 %1184
    %v1186 = vrcp.pop %v1185
    %v1187 = vmul.f32 %v1185, %v1186
    %v1188 = vsub.f32 1.0, %v1187
    %v1189 = vmul.f32 %v1186, %v1188
    %v1190 = vadd.f32 %v1186, %v1189
    %vm1191 = vweird.f32 %v1185
    %vm1192 = vweird.f32 %v1186
    %vm1193 = vmor %vm1191, %vm1192
    %v1194 = vsel %vm1193, %v1186, %v1190
    %v1195 = vand.u32 2147483647, %v1185
    %vm1196 = vcmp.eq.f32.partialorder %v1195, 8.507059e+37
    %v1197 = vand.u32 %v1185, 2147483648
    %v1198 = vor.u32 1.1754944e-38, %v1197
    %v1199 = vsel %vm1196, %v1198, %v1194
    %v1200 = vmul.f32 %v1182, %v1199
    %1201 = vrot.lane.b32.xlu0 %v371, 48
    %v1202 = vpop.permute.xlu0 %1201
    %1203 = vrot.lane.b32.xlu0 %v362, 48
    %v1204 = vpop.permute.xlu0 %1203
    %1205 = vrot.lane.b32.xlu0 %v365, 48
    %v1206 = vpop.permute.xlu0 %1205
    %v1211 = vsel %vm590, %v1200, 0
    %1213 = vmatpush.msra.mxu0 0.0
    %1214 = vmatpush.msra.mxu0 0.0
    %1215 = vmatpush.msra.mxu0 0.0
    %1216 = vmatpush.msra.mxu0 0.0
    %1217 = vmatpush.msra.mxu0 0.0
    %1218 = vmatpush.msra.mxu0 0.0
    %1219 = vmatpush.msra.mxu0 0.0
    %1220 = vmatpush.msra.mxu0 0.0
    %1221 = vmatpush.msra.mxu0 0.0
    %1222 = vmatpush.msra.mxu0 0.0
    %1223 = vmatpush.msra.mxu0 0.0
    %1224 = vmatpush.msra.mxu0 0.0
    %1225 = vmatpush.msra.mxu0 0.0
    %1226 = vmatpush.msra.mxu0 %v1206
    %1227 = vmatpush.msra.mxu0 %v1204
    %1228 = vmatpush.msra.mxu0 %v1202
    %1229 = vmatmul.f32.gmra.mxu0 %v1211
    %v1230 = vpop.f32.mrf.mxu0
    %v1231 = vadd.f32 0.0, %v1230
    %1232 = vdwg.mxu0
    %1234 = vrot.lane.b32.xlu0 %v1231, 16
    %v1235 = vpop.permute.xlu0 %1234
    %v1237 = vsel %vm450, %v1038, %v1235
    %v1238 = vld [vmem:[%s2] sm:$0xff]
    %v1239 = vld [vmem:[%s2 + $0x8] sm:$0xff]
    %v1240 = vld [vmem:[%s2 + $0x10] sm:$0xff]
    %v1241 = vld [vmem:[%s2 + $0x18] sm:$0xff]
    %v1243 = vsel %vm54, %v844, 0
    %v1246 = vsel %vm54, %v1237, 0
    %v1249 = vsel %vm54, %v1238, 0
    %v1252 = vsel %vm54, %v1239, 0
    %v1255 = vsel %vm54, %v1240, 0
    %v1258 = vsel %vm54, %v1241, 0
    %1260 = vmatpush.xpose.msra.mxu0 0.0
    %1261 = vmatpush.xpose.msra.mxu0 0.0
    %1262 = vmatpush.xpose.msra.mxu0 0.0
    %1263 = vmatpush.xpose.msra.mxu0 0.0
    %1264 = vmatpush.xpose.msra.mxu0 0.0
    %1265 = vmatpush.xpose.msra.mxu0 0.0
    %1266 = vmatpush.xpose.msra.mxu0 0.0
    %1267 = vmatpush.xpose.msra.mxu0 0.0
    %1268 = vmatpush.xpose.msra.mxu0 0.0
    %1269 = vmatpush.xpose.msra.mxu0 0.0
    %1270 = vmatpush.xpose.msra.mxu0 0.0
    %1271 = vmatpush.xpose.msra.mxu0 0.0
    %1272 = vmatpush.xpose.msra.mxu0 %v1258
    %1273 = vmatpush.xpose.msra.mxu0 %v1255
    %1274 = vmatpush.xpose.msra.mxu0 %v1252
    %1275 = vmatpush.xpose.msra.mxu0 %v1249
    %1276 = vmatmul.f32.gmra.mxu0 %v1243
    %v1277 = vpop.f32.mrf.mxu0
    %v1278 = vadd.f32 0.0, %v1277
    %1279 = vmatmul.f32.gmra.mxu0 %v1246
    %v1280 = vpop.f32.mrf.mxu0
    %v1281 = vadd.f32 0.0, %v1280
    %1282 = vdwg.mxu0
    %v1283 = vadd.f32 %v42, %v1278
    %v1284 = vadd.f32 %v43, %v1281
    %v1285 = vsel %vm54, %v1283, 0.0
    %1286 = vadd.xlane.f32.xlu0 %v1285
    %v1287 = vpop.xlane.xlu0 %1286
    %v1288 = vsel %vm54, %v1284, 0.0
    %1289 = vadd.xlane.f32.xlu0 %v1288
    %v1290 = vpop.xlane.xlu0 %1289
    %v1291 = vmul.f32 %v1287, %v85
    %v1292 = vmul.f32 %v1290, %v85
    %v1293 = vsub.f32 %v1283, %v1291
    %v1294 = vsub.f32 %v1284, %v1292
    %v1295 = vmul.f32 %v1293, %v1293
    %v1296 = vmul.f32 %v1294, %v1294
    %v1297 = vsel %vm54, %v1295, 0.0
    %1298 = vadd.xlane.f32.xlu0 %v1297
    %v1299 = vpop.xlane.xlu0 %1298
    %v1300 = vsel %vm54, %v1296, 0.0
    %1301 = vadd.xlane.f32.xlu0 %v1300
    %v1302 = vpop.xlane.xlu0 %1301
    %v1303 = vmul.f32 %v1299, %v85
    %v1304 = vmul.f32 %v1302, %v85
    %v1305 = vadd.f32 %v1303, 1e-05
    %v1306 = vadd.f32 %v1304, 1e-05
    %v1307 = vrsqrt.pop %v1305
    %v1308 = vmul.f32 %v1307, %v1305
    %v1309 = vmul.f32 %v1308, %v1307
    %v1310 = vmul.f32 0.5, %v1309
    %v1311 = vsub.f32 1.5, %v1310
    %v1312 = vmul.f32 %v1307, %v1311
    %vm1313 = vweird.f32 %v1305
    %vm1314 = vweird.f32 %v1307
    %vm1315 = vmor %vm1313, %vm1314
    %v1316 = vsel %vm1315, %v1307, %v1312
    %v1317 = vrsqrt.pop %v1306
    %v1318 = vmul.f32 %v1317, %v1306
    %v1319 = vmul.f32 %v1318, %v1317
    %v1320 = vmul.f32 0.5, %v1319
    %v1321 = vsub.f32 1.5, %v1320
    %v1322 = vmul.f32 %v1317, %v1321
    %vm1323 = vweird.f32 %v1306
    %vm1324 = vweird.f32 %v1317
    %vm1325 = vmor %vm1323, %vm1324
    %v1326 = vsel %vm1325, %v1317, %v1322
    %v1327 = vmul.f32 %v1293, %v1316
    %v1328 = vmul.f32 %v1294, %v1326
    %v1330 = vperm.slane %v52, 0
    %v1332 = vmul.f32 %v1327, %v1330
    %v1333 = vmul.f32 %v1328, %v1330
    %v1335 = vperm.slane %v53, 0
    %v1337 = vadd.f32 %v1332, %v1335
    %v1338 = vadd.f32 %v1333, %v1335
    %v1339 = vld [vmem:[%s4] sm:$0xff]
    %v1340 = vld [vmem:[%s4 + $0x8] sm:$0xff]
    %v1341 = vld [vmem:[%s4 + $0x10] sm:$0xff]
    %v1342 = vld [vmem:[%s4 + $0x18] sm:$0xff]
    %v1343 = vld [vmem:[%s4 + $0x20] sm:$0xff]
    %v1344 = vld [vmem:[%s4 + $0x28] sm:$0xff]
    %v1345 = vld [vmem:[%s4 + $0x30] sm:$0xff]
    %v1346 = vld [vmem:[%s4 + $0x38] sm:$0xff]
    %v1347 = vld [vmem:[%s5] sm:$0x1]
    %v1349 = vperm.slane %v1347, 0
    %v1352 = vsel %vm54, %v1337, 0
    %v1355 = vsel %vm54, %v1338, 0
    %v1358 = vsel %vm54, %v1339, 0
    %v1361 = vsel %vm54, %v1340, 0
    %v1364 = vsel %vm54, %v1341, 0
    %v1367 = vsel %vm54, %v1342, 0
    %v1370 = vsel %vm54, %v1343, 0
    %v1373 = vsel %vm54, %v1344, 0
    %v1376 = vsel %vm54, %v1345, 0
    %v1379 = vsel %vm54, %v1346, 0
    %1381 = vmatpush.xpose.msra.mxu0 0.0
    %1382 = vmatpush.xpose.msra.mxu0 0.0
    %1383 = vmatpush.xpose.msra.mxu0 0.0
    %1384 = vmatpush.xpose.msra.mxu0 0.0
    %1385 = vmatpush.xpose.msra.mxu0 0.0
    %1386 = vmatpush.xpose.msra.mxu0 0.0
    %1387 = vmatpush.xpose.msra.mxu0 0.0
    %1388 = vmatpush.xpose.msra.mxu0 0.0
    %1389 = vmatpush.xpose.msra.mxu0 %v1379
    %1390 = vmatpush.xpose.msra.mxu0 %v1376
    %1391 = vmatpush.xpose.msra.mxu0 %v1373
    %1392 = vmatpush.xpose.msra.mxu0 %v1370
    %1393 = vmatpush.xpose.msra.mxu0 %v1367
    %1394 = vmatpush.xpose.msra.mxu0 %v1364
    %1395 = vmatpush.xpose.msra.mxu0 %v1361
    %1396 = vmatpush.xpose.msra.mxu0 %v1358
    %1397 = vmatmul.f32.gmra.mxu0 %v1352
    %v1398 = vpop.f32.mrf.mxu0
    %v1399 = vadd.f32 %v1349, %v1398
    %1400 = vmatmul.f32.gmra.mxu0 %v1355
    %v1401 = vpop.f32.mrf.mxu0
    %v1402 = vadd.f32 %v1349, %v1401
    %1403 = vdwg.mxu0
    %v1404 = vmax.f32 %v1399, 0.0
    %v1405 = vmax.f32 %v1402, 0.0
    %v1406 = vld [vmem:[%s6] sm:$0xff]
    %v1407 = vld [vmem:[%s6 + $0x8] sm:$0xff]
    %v1408 = vld [vmem:[%s6 + $0x10] sm:$0xff]
    %v1409 = vld [vmem:[%s6 + $0x18] sm:$0xff]
    %v1410 = vld [vmem:[%s7] sm:$0x1]
    %v1412 = vperm.slane %v1410, 0
    %vm1414 = vcmask 523264
    %v1416 = vsel %vm1414, %v1404, 0
    %v1419 = vsel %vm1414, %v1405, 0
    %v1422 = vsel %vm1414, %v1406, 0
    %v1425 = vsel %vm1414, %v1407, 0
    %v1428 = vsel %vm1414, %v1408, 0
    %v1431 = vsel %vm1414, %v1409, 0
    %1433 = vmatpush.xpose.msra.mxu0 0.0
    %1434 = vmatpush.xpose.msra.mxu0 0.0
    %1435 = vmatpush.xpose.msra.mxu0 0.0
    %1436 = vmatpush.xpose.msra.mxu0 0.0
    %1437 = vmatpush.xpose.msra.mxu0 0.0
    %1438 = vmatpush.xpose.msra.mxu0 0.0
    %1439 = vmatpush.xpose.msra.mxu0 0.0
    %1440 = vmatpush.xpose.msra.mxu0 0.0
    %1441 = vmatpush.xpose.msra.mxu0 0.0
    %1442 = vmatpush.xpose.msra.mxu0 0.0
    %1443 = vmatpush.xpose.msra.mxu0 0.0
    %1444 = vmatpush.xpose.msra.mxu0 0.0
    %1445 = vmatpush.xpose.msra.mxu0 %v1431
    %1446 = vmatpush.xpose.msra.mxu0 %v1428
    %1447 = vmatpush.xpose.msra.mxu0 %v1425
    %1448 = vmatpush.xpose.msra.mxu0 %v1422
    %1449 = vmatmul.f32.gmra.mxu0 %v1416
    %v1450 = vpop.f32.mrf.mxu0
    %v1451 = vadd.f32 %v1412, %v1450
    %1452 = vmatmul.f32.gmra.mxu0 %v1419
    %v1453 = vpop.f32.mrf.mxu0
    %v1454 = vadd.f32 %v1412, %v1453
    %1455 = vdwg.mxu0
    %v1456 = vadd.f32 %v1283, %v1451
    %v1457 = vadd.f32 %v1284, %v1454
    %1458 = vst.msk [vmem:[#allocation2] sm:$0xff] %vm54, %v1456
    %1459 = vst.msk [vmem:[#allocation2 + $0x8] sm:$0xff] %vm54, %v1457
    // Predicated region
    $region50: #{tpu_custom_call.1} parent=1 // pred_check
      _
    $region51: #{tpu_custom_call.1} parent=1 // pred_check_branch
      %1461 = sbr.rel (0) target = $region53
    $region52: #{tpu_custom_call.1} parent=1 // pred_region
      %1463 = vsyncadd [#allocation3], 0
      %s1464 = sshll.u32 [#allocation2], 4
      %s1465 = int_to_ptr.vmem [resolvable:$true] %s1464
      %s1466 = sshll.u32 %s12, 4
      %s1467 = int_to_ptr.hbm [resolvable:$true] %s1466
      %1472 = dma.vmem_to_hbm [thread:$0]  %s1465, 256, %s1467, [#allocation3], 128, 128, 8
    $region53: #{tpu_custom_call.1} parent=1 // pred_fallthru
      _
    // Predicated region
    $region54: #{tpu_custom_call.1} parent=1 // pred_check
      _
    $region55: #{tpu_custom_call.1} parent=1 // pred_check_branch
      %1474 = sbr.rel (0) target = $region57
    $region56: #{tpu_custom_call.1} parent=1 // pred_region
      %1476 = dma.done [#allocation3], 256
    $region57: #{tpu_custom_call.1} parent=1 // pred_fallthru
      _
    %1477 = vsyncpa [#allocation3], 1

</llo_original>
